<compile_context>
chip_gen: v6e
topology: v6e:2x2x1
jax: 0.10.0
libtpu: 0.0.40
codegen_flags: <defaults>
</compile_context>

<pallas_src>
import functools

import jax
import jax.numpy as jnp
from jax.experimental import pallas as pl
from jax.experimental.pallas import tpu as pltpu


_VMEM_LIMIT = 32 * 1024 * 1024  # explicit on every call (v5e default is 16 MiB)


def _round_up(x, m):
    return (x + m - 1) // m * m


def _largest_divisor_leq(n, cap):
    cap = max(1, min(n, int(cap)))
    for d in range(cap, 0, -1):
        if n % d == 0:
            return d
    return 1


# --------------------------------------------------------------------------
# Pallas kernel 1: fused 3x3 conv (padding=1) + bias + ReLU, row-band tiled.
#
# The halo-padded image is flattened row-major to ((H+3)*Qp, Cin) with
# Qp = round_up(W+2, 8), so tap (dh, dw) of the 3x3 window is a static flat
# row offset dh*Qp + dw.  One grid step covers `band` image rows: the main
# window (band*Qp flat rows) plus 3 extra padded rows of halo are stitched
# into a VMEM scratch, the 9 shifted matmuls are accumulated in f32, bias +
# ReLU are applied, and the junk columns (q >= W) are sliced away in VMEM
# before the store.
# --------------------------------------------------------------------------
def _conv3x3_kernel(xm_ref, xh0_ref, xh1_ref, xh2_ref, w_ref, b_ref, o_ref,
                    x_all_ref, *, band, qp, w_out, taps):
    cout = o_ref.shape[-1]
    hq = band * qp
    # Stitch band + halo into one contiguous VMEM buffer (all chunks are
    # multiples of Qp (>= 8) rows, so the copies are sublane-aligned).
    x_all_ref[pl.ds(0, hq), :] = xm_ref[0]
    x_all_ref[pl.ds(hq, qp), :] = xh0_ref[0]
    x_all_ref[pl.ds(hq + qp, qp), :] = xh1_ref[0]
    x_all_ref[pl.ds(hq + 2 * qp, qp), :] = xh2_ref[0]

    acc = jnp.zeros((hq, cout), jnp.float32)
    for t, off in enumerate(taps):            # static offsets; dw==0 taps are
        xs = x_all_ref[pl.ds(off, hq), :]     # fully (8,128)-aligned.
        acc = acc + jnp.dot(xs, w_ref[t], preferred_element_type=jnp.float32)

    r = jnp.maximum(acc + b_ref[...], 0.0).astype(o_ref.dtype)
    # Drop the junk columns in VMEM: (band*Qp, C) -> (band, Qp, C) -> (band, W, C).
    o_ref[0] = r.reshape(band, qp, cout)[:, :w_out, :]


def _pick_conv_band(H, Qp, W, Cin, Cout, target_bytes=16 * 2 ** 20):
    """Largest divisor of H whose steady-state VMEM estimate fits the target."""
    def est(band):
        bytes_in = 2 * band * Qp * Cin * 2        # double-buffered main window
        bytes_halo = 2 * 3 * Qp * Cin * 2
        bytes_w = 2 * 9 * Cin * Cout * 2
        bytes_out = 2 * band * W * Cout * 2
        bytes_acc = band * Qp * Cout * 4          # f32 accumulator value
        bytes_cat = (band + 3) * Qp * Cin * 2     # stitched scratch
        return bytes_in + bytes_halo + bytes_w + bytes_out + bytes_acc + bytes_cat

    for d in range(H, 0, -1):
        if H % d == 0 and est(d) <= target_bytes:
            return d
    return 1


def conv3x3_relu(x, w, b, band=None):
    """Fused 3x3 conv (stride 1, padding 1) + bias + ReLU.

    x: (N,H,W,Cin) NHWC bf16; w: (3,3,Cin,Cout) bf16; b: (Cout,) f32."""
    N, H, W, Cin = x.shape
    Cout = w.shape[-1]
    Qp = _round_up(W + 2, 8)   # padded width; multiple of 8 keeps dh*Qp aligned
    # halo pad: 1 row top, 2 rows bottom; 1 col left, Qp - W - 1 cols right.
    xp = jnp.pad(x, ((0, 0), (1, 2), (1, Qp - W - 1), (0, 0)))
    xf = xp.reshape(N, (H + 3) * Qp, Cin)
    wf = w.reshape(9, Cin, Cout).astype(jnp.bfloat16)
    bf = b.reshape(1, Cout).astype(jnp.float32)

    if band is None:
        band = _pick_conv_band(H, Qp, W, Cin, Cout)
    assert H % band == 0, (H, band)
    n_bands = H // band
    taps = tuple(dh * Qp + dw for dh in range(3) for dw in range(3))

    kernel = functools.partial(_conv3x3_kernel, band=band, qp=Qp, w_out=W,
                               taps=taps)
    # Main window: band*Qp flat rows per step.  Halo: the 3 padded image rows
    # directly after the window (blocked in units of Qp flat rows each).
    main_spec = pl.BlockSpec((1, band * Qp, Cin), lambda n, bi: (n, bi, 0))
    halo0 = pl.BlockSpec((1, Qp, Cin), lambda n, bi: (n, (bi + 1) * band, 0))
    halo1 = pl.BlockSpec((1, Qp, Cin), lambda n, bi: (n, (bi + 1) * band + 1, 0))
    halo2 = pl.BlockSpec((1, Qp, Cin), lambda n, bi: (n, (bi + 1) * band + 2, 0))

    return pl.pallas_call(
        kernel,
        out_shape=jax.ShapeDtypeStruct((N, H, W, Cout), x.dtype),
        grid_spec=pltpu.PrefetchScalarGridSpec(
            num_scalar_prefetch=0,
            grid=(N, n_bands),
            in_specs=[
                main_spec, halo0, halo1, halo2,
                # weight/bias index maps are independent of (n, bi) so the
                # resident slab is not re-DMA'd per band.
                pl.BlockSpec((9, Cin, Cout), lambda n, bi: (0, 0, 0)),
                pl.BlockSpec((1, Cout), lambda n, bi: (0, 0)),
            ],
            out_specs=pl.BlockSpec((1, band, W, Cout),
                                   lambda n, bi: (n, bi, 0, 0)),
            scratch_shapes=[pltpu.VMEM(((band + 3) * Qp, Cin), x.dtype)],
        ),
        compiler_params=pltpu.CompilerParams(
            dimension_semantics=("parallel", "parallel"),
            vmem_limit_bytes=_VMEM_LIMIT),
    )(xf, xf, xf, xf, wf, bf)


# --------------------------------------------------------------------------
# Pallas kernel 2: 2x2 max pool (stride 2), row-banded, dense tiles.
#
# The input is viewed as (N, H, W//2, 2*C) (a free row-major reshape), so
# every load is lane-dense.  Column pairs are pooled with a lane slice,
# row pairs with a leading-dim reshape + max.
# --------------------------------------------------------------------------
def _maxpool_kernel(x_ref, o_ref):
    c = o_ref.shape[-1]
    pb = o_ref.shape[1]
    v = x_ref[0]                                    # (2*pb, Wo, 2*C)
    v = jnp.maximum(v[:, :, :c], v[:, :, c:])       # pool column pairs
    v = v.reshape(pb, 2, v.shape[1], c)             # split leading (row) dim
    o_ref[0] = jnp.max(v, axis=1)                   # pool row pairs


def maxpool2x2(x):
    """x: (N,H,W,C) NHWC with even H, W -> (N, H//2, W//2, C)."""
    N, H, W, C = x.shape
    assert H % 2 == 0 and W % 2 == 0
    Ho, Wo = H // 2, W // 2
    xv = x.reshape(N, H, Wo, 2 * C)                 # free view
    row_bytes = 2 * Wo * 2 * C * x.dtype.itemsize   # input bytes / output row
    pb = _largest_divisor_leq(Ho, max(1, (4 * 2 ** 20) // max(row_bytes, 1)))
    return pl.pallas_call(
        _maxpool_kernel,
        out_shape=jax.ShapeDtypeStruct((N, Ho, Wo, C), x.dtype),
        grid_spec=pltpu.PrefetchScalarGridSpec(
            num_scalar_prefetch=0,
            grid=(N, Ho // pb),
            in_specs=[pl.BlockSpec((1, 2 * pb, Wo, 2 * C),
                                   lambda n, bi: (n, bi, 0, 0))],
            out_specs=pl.BlockSpec((1, pb, Wo, C), lambda n, bi: (n, bi, 0, 0)),
        ),
        compiler_params=pltpu.CompilerParams(
            dimension_semantics=("parallel", "parallel"),
            vmem_limit_bytes=_VMEM_LIMIT),
    )(xv)


# --------------------------------------------------------------------------
# Pallas kernel 3: tiled matmul with fused bias add + optional ReLU (FC)
# --------------------------------------------------------------------------
def _matmul_bias_kernel(x_ref, w_ref, b_ref, o_ref, acc_ref, *, relu):
    k = pl.program_id(2)

    @pl.when(k == 0)
    def _():
        acc_ref[...] = jnp.zeros_like(acc_ref)

    acc_ref[...] += jnp.dot(x_ref[...], w_ref[...],
                            preferred_element_type=jnp.float32)

    @pl.when(k == pl.num_programs(2) - 1)
    def _():
        r = acc_ref[...] + b_ref[...]
        if relu:
            r = jnp.maximum(r, 0.0)
        o_ref[...] = r.astype(o_ref.dtype)


def _pick_fc_tile(dim, cap, mult=256):
    """Largest multiple of `mult` <= cap that divides round_up(dim, mult)."""
    dim_p = _round_up(dim, mult)
    best = mult
    t = mult
    while t <= min(cap, dim_p):
        if dim_p % t == 0:
            best = t
        t += mult
    return best


def matmul_bias(x, w, b, relu, out_dtype=None):
    """y = x @ w + b (optional ReLU). x:(M,K) bf16, w:(K,N) bf16, b:(N,) f32."""
    M, K = x.shape
    K2, N = w.shape
    assert K == K2
    out_dtype = out_dtype or x.dtype
    tm = min(128, _round_up(M, 8))
    # Weight-streaming tiles: multiples of 256 up to 2048, chosen so the big
    # weights (25088 / 4096 wide) never get padded/copied in HBM.
    tk = _pick_fc_tile(K, 2048)
    tn = _pick_fc_tile(N, 2048)
    Mp, Kp, Np = _round_up(M, tm), _round_up(K, tk), _round_up(N, tn)
    xp = x if (Mp == M and Kp == K) else jnp.pad(x, ((0, Mp - M), (0, Kp - K)))
    wp = w if (Kp == K and Np == N) else jnp.pad(w, ((0, Kp - K), (0, Np - N)))
    bp = jnp.pad(b.astype(jnp.float32).reshape(1, -1), ((0, 0), (0, Np - N)))

    out = pl.pallas_call(
        functools.partial(_matmul_bias_kernel, relu=relu),
        out_shape=jax.ShapeDtypeStruct((Mp, Np), out_dtype),
        grid_spec=pltpu.PrefetchScalarGridSpec(
            num_scalar_prefetch=0,
            grid=(Mp // tm, Np // tn, Kp // tk),
            in_specs=[
                pl.BlockSpec((tm, tk), lambda i, j, k: (i, k)),
                pl.BlockSpec((tk, tn), lambda i, j, k: (k, j)),
                pl.BlockSpec((1, tn), lambda i, j, k: (0, j)),
            ],
            out_specs=pl.BlockSpec((tm, tn), lambda i, j, k: (i, j)),
            scratch_shapes=[pltpu.VMEM((tm, tn), jnp.float32)],
        ),
        compiler_params=pltpu.CompilerParams(
            dimension_semantics=("parallel", "parallel", "arbitrary"),
            vmem_limit_bytes=_VMEM_LIMIT),
    )(xp, wp, bp)
    return out[:M, :N] if (Mp != M or Np != N) else out


# --------------------------------------------------------------------------
# VGG16 configuration (matches Custom_VGG16.__init__ layer structure)
# --------------------------------------------------------------------------
CONV_CFG = [
    [(3, 64), (64, 64)],
    [(64, 128), (128, 128)],
    [(128, 256), (256, 256), (256, 256)],
    [(256, 512), (512, 512), (512, 512)],
    [(512, 512), (512, 512), (512, 512)],
]


def init_params(key, img_size):
    """Weights stored in bf16 (MXU dtype), biases in f32."""
    assert img_size % 32 == 0
    s = img_size // 32
    fc_cfg = [(512 * s * s, 4096), (4096, 4096), (4096, 131)]
    params = {"conv": [], "fc": []}
    for block in CONV_CFG:
        blk = []
        for cin, cout in block:
            key, k1 = jax.random.split(key)
            w = (jax.random.normal(k1, (3, 3, cin, cout), jnp.float32)
                 * jnp.sqrt(2.0 / (9 * cin))).astype(jnp.bfloat16)
            b = jnp.zeros((cout,), jnp.float32)
            blk.append((w, b))
        params["conv"].append(blk)
    for fin, fout in fc_cfg:
        key, k1 = jax.random.split(key)
        w = (jax.random.normal(k1, (fin, fout), jnp.float32)
             * jnp.sqrt(2.0 / fin)).astype(jnp.bfloat16)
        b = jnp.zeros((fout,), jnp.float32)
        params["fc"].append((w, b))
    return params


def custom_vgg16_forward(params, x_nchw):
    # NCHW (PyTorch) -> NHWC (channels on the 128-lane axis), bf16 compute.
    x = jnp.transpose(x_nchw, (0, 2, 3, 1)).astype(jnp.bfloat16)
    for blk in params["conv"]:
        for w, b in blk:
            x = conv3x3_relu(x, w, b)
        x = maxpool2x2(x)

    # flatten in PyTorch (NCHW) order: out.reshape(N, -1) over (C, H, W)
    n = x.shape[0]
    flat = jnp.transpose(x, (0, 3, 1, 2)).reshape(n, -1)

    (w1, b1), (w2, b2), (w3, b3) = params["fc"]
    h = matmul_bias(flat, w1, b1, relu=True)
    h = matmul_bias(h, w2, b2, relu=True)
    out = matmul_bias(h, w3, b3, relu=False, out_dtype=jnp.float32)
    return out  # (N, 131) f32


if __name__ == "__main__":
    key = jax.random.PRNGKey(0)

    # ---- unit checks against lax references (small shapes, bf16-loose tol) --
    k1, k2, k3, key = jax.random.split(key, 4)
    xs = jax.random.normal(k1, (2, 16, 16, 32), jnp.float32).astype(jnp.bfloat16)
    ws = (jax.random.normal(k2, (3, 3, 32, 64), jnp.float32) * 0.1
          ).astype(jnp.bfloat16)
    bs = jax.random.normal(k3, (64,), jnp.float32) * 0.1

    got = conv3x3_relu(xs, ws, bs, band=4)          # force the multi-band path
    ref = jax.lax.conv_general_dilated(
        xs.astype(jnp.float32), ws.astype(jnp.float32), (1, 1), "SAME",
        dimension_numbers=("NHWC", "HWIO", "NHWC"))
    ref = jnp.maximum(ref + bs, 0.0)
    assert jnp.allclose(got.astype(jnp.float32), ref, rtol=5e-2, atol=5e-2), \
        "conv3x3_relu mismatch vs lax reference"

    gp = maxpool2x2(got)
    rp = jax.lax.reduce_window(got.astype(jnp.float32), -jnp.inf, jax.lax.max,
                               (1, 2, 2, 1), (1, 2, 2, 1), "VALID")
    assert jnp.allclose(gp.astype(jnp.float32), rp, rtol=1e-5, atol=1e-5), \
        "maxpool2x2 mismatch vs lax reference"

    # ---- full forward at the smallest size compatible with 5 pool stages ----
    # The PyTorch module hard-codes nn.Linear(25088, 4096), i.e. 224x224
    # inputs; IMG_SIZE = 224 reproduces that exact module, IMG_SIZE = 32 runs
    # the size-consistent variant quickly for the self-test.
    IMG_SIZE = 32
    kp, kx = jax.random.split(key)
    params = init_params(kp, IMG_SIZE)
    x = jax.random.normal(kx, (2, 3, IMG_SIZE, IMG_SIZE), jnp.float32)

    fwd = jax.jit(custom_vgg16_forward)
    out = jax.block_until_ready(fwd(params, x))

    assert out.shape == (2, 131), out.shape
    assert bool(jnp.all(jnp.isfinite(out)))
    print("KERNEL_OK")
</pallas_src>

<mosaic_0001>
module attributes {stable_mosaic.version = 11 : i64} {
  func.func @_conv3x3_kernel(%arg0: i32, %arg1: i32, %arg2: memref<1x96x32xbf16, #tpu.memory_space<vmem>>, %arg3: memref<1x24x32xbf16, #tpu.memory_space<vmem>>, %arg4: memref<1x24x32xbf16, #tpu.memory_space<vmem>>, %arg5: memref<1x24x32xbf16, #tpu.memory_space<vmem>>, %arg6: memref<9x32x64xbf16, #tpu.memory_space<vmem>>, %arg7: memref<1x64xf32, #tpu.memory_space<vmem>>, %arg8: memref<1x4x16x64xbf16, #tpu.memory_space<vmem>>, %arg9: memref<168x32xbf16, #tpu.memory_space<vmem>>) attributes {dimension_semantics = [#tpu.dimension_semantics<parallel>, #tpu.dimension_semantics<parallel>], iteration_bounds = array<i64: 2, 4>, scalar_prefetch = 0 : i64, scratch_operands = 1 : i64, tpu.core_type = #tpu.core_type<tc>, window_params = [{transform_indices = @transform_0, window_bounds = array<i64: 1, 96, 32>}, {transform_indices = @transform_1, window_bounds = array<i64: 1, 24, 32>}, {transform_indices = @transform_2, window_bounds = array<i64: 1, 24, 32>}, {transform_indices = @transform_3, window_bounds = array<i64: 1, 24, 32>}, {pipeline_mode = #tpu.pipeline_mode<synchronous>, transform_indices = @transform_4, window_bounds = array<i64: 9, 32, 64>}, {pipeline_mode = #tpu.pipeline_mode<synchronous>, transform_indices = @transform_5, window_bounds = array<i64: 1, 64>}, {transform_indices = @transform_6, window_bounds = array<i64: 1, 4, 16, 64>}]} {
    %c0 = arith.constant 0 : index
    %c0_0 = arith.constant 0 : index
    %c0_1 = arith.constant 0 : index
    %0 = vector.load %arg2[%c0, %c0_0, %c0_1] : memref<1x96x32xbf16, #tpu.memory_space<vmem>>, vector<1x96x32xbf16>
    %1 = vector.shape_cast %0 : vector<1x96x32xbf16> to vector<96x32xbf16>
    %c0_2 = arith.constant 0 : index
    %c0_3 = arith.constant 0 : index
    %2 = vector.load %arg9[%c0_2, %c0_3] : memref<168x32xbf16, #tpu.memory_space<vmem>>, vector<96x32xbf16>
    tpu.vector_store %arg9[%c0_2, %c0_3], %1 {strides = array<i32>} : memref<168x32xbf16, #tpu.memory_space<vmem>>, vector<96x32xbf16>,
    %c0_4 = arith.constant 0 : index
    %c0_5 = arith.constant 0 : index
    %c0_6 = arith.constant 0 : index
    %3 = vector.load %arg3[%c0_4, %c0_5, %c0_6] : memref<1x24x32xbf16, #tpu.memory_space<vmem>>, vector<1x24x32xbf16>
    %4 = vector.shape_cast %3 : vector<1x24x32xbf16> to vector<24x32xbf16>
    %c96 = arith.constant 96 : index
    %c0_7 = arith.constant 0 : index
    %5 = vector.load %arg9[%c96, %c0_7] : memref<168x32xbf16, #tpu.memory_space<vmem>>, vector<24x32xbf16>
    tpu.vector_store %arg9[%c96, %c0_7], %4 {strides = array<i32>} : memref<168x32xbf16, #tpu.memory_space<vmem>>, vector<24x32xbf16>,
    %c0_8 = arith.constant 0 : index
    %c0_9 = arith.constant 0 : index
    %c0_10 = arith.constant 0 : index
    %6 = vector.load %arg4[%c0_8, %c0_9, %c0_10] : memref<1x24x32xbf16, #tpu.memory_space<vmem>>, vector<1x24x32xbf16>
    %7 = vector.shape_cast %6 : vector<1x24x32xbf16> to vector<24x32xbf16>
    %c120 = arith.constant 120 : index
    %c0_11 = arith.constant 0 : index
    %8 = vector.load %arg9[%c120, %c0_11] : memref<168x32xbf16, #tpu.memory_space<vmem>>, vector<24x32xbf16>
    tpu.vector_store %arg9[%c120, %c0_11], %7 {strides = array<i32>} : memref<168x32xbf16, #tpu.memory_space<vmem>>, vector<24x32xbf16>,
    %c0_12 = arith.constant 0 : index
    %c0_13 = arith.constant 0 : index
    %c0_14 = arith.constant 0 : index
    %9 = vector.load %arg5[%c0_12, %c0_13, %c0_14] : memref<1x24x32xbf16, #tpu.memory_space<vmem>>, vector<1x24x32xbf16>
    %10 = vector.shape_cast %9 : vector<1x24x32xbf16> to vector<24x32xbf16>
    %c144 = arith.constant 144 : index
    %c0_15 = arith.constant 0 : index
    %11 = vector.load %arg9[%c144, %c0_15] : memref<168x32xbf16, #tpu.memory_space<vmem>>, vector<24x32xbf16>
    tpu.vector_store %arg9[%c144, %c0_15], %10 {strides = array<i32>} : memref<168x32xbf16, #tpu.memory_space<vmem>>, vector<24x32xbf16>,
    %cst = arith.constant 0.000000e+00 : f32
    %12 = vector.broadcast %cst : f32 to vector<96x64xf32>
    %c0_16 = arith.constant 0 : index
    %c0_17 = arith.constant 0 : index
    %13 = vector.load %arg9[%c0_16, %c0_17] : memref<168x32xbf16, #tpu.memory_space<vmem>>, vector<96x32xbf16>
    %c0_18 = arith.constant 0 : index
    %c0_19 = arith.constant 0 : index
    %c0_20 = arith.constant 0 : index
    %14 = vector.load %arg6[%c0_18, %c0_19, %c0_20] : memref<9x32x64xbf16, #tpu.memory_space<vmem>>, vector<1x32x64xbf16>
    %15 = vector.shape_cast %14 : vector<1x32x64xbf16> to vector<32x64xbf16>
    %cst_21 = arith.constant dense<0.000000e+00> : vector<96x64xf32>
    %16 = tpu.matmul %13, %15, %cst_21 {dimension_numbers = #tpu.dot_dimension_numbers<[1], [0], [0], [1], [0, 0, 1, 1], [], []>} : vector<96x32xbf16>, vector<32x64xbf16>, vector<96x64xf32> -> vector<96x64xf32>
    %17 = arith.addf %12, %16 : vector<96x64xf32>
    %c1 = arith.constant 1 : index
    %c0_22 = arith.constant 0 : index
    %18 = vector.load %arg9[%c1, %c0_22] : memref<168x32xbf16, #tpu.memory_space<vmem>>, vector<96x32xbf16>
    %c1_23 = arith.constant 1 : index
    %c0_24 = arith.constant 0 : index
    %c0_25 = arith.constant 0 : index
    %19 = vector.load %arg6[%c1_23, %c0_24, %c0_25] : memref<9x32x64xbf16, #tpu.memory_space<vmem>>, vector<1x32x64xbf16>
    %20 = vector.shape_cast %19 : vector<1x32x64xbf16> to vector<32x64xbf16>
    %cst_26 = arith.constant dense<0.000000e+00> : vector<96x64xf32>
    %21 = tpu.matmul %18, %20, %cst_26 {dimension_numbers = #tpu.dot_dimension_numbers<[1], [0], [0], [1], [0, 0, 1, 1], [], []>} : vector<96x32xbf16>, vector<32x64xbf16>, vector<96x64xf32> -> vector<96x64xf32>
    %22 = arith.addf %17, %21 : vector<96x64xf32>
    %c2 = arith.constant 2 : index
    %c0_27 = arith.constant 0 : index
    %23 = vector.load %arg9[%c2, %c0_27] : memref<168x32xbf16, #tpu.memory_space<vmem>>, vector<96x32xbf16>
    %c2_28 = arith.constant 2 : index
    %c0_29 = arith.constant 0 : index
    %c0_30 = arith.constant 0 : index
    %24 = vector.load %arg6[%c2_28, %c0_29, %c0_30] : memref<9x32x64xbf16, #tpu.memory_space<vmem>>, vector<1x32x64xbf16>
    %25 = vector.shape_cast %24 : vector<1x32x64xbf16> to vector<32x64xbf16>
    %cst_31 = arith.constant dense<0.000000e+00> : vector<96x64xf32>
    %26 = tpu.matmul %23, %25, %cst_31 {dimension_numbers = #tpu.dot_dimension_numbers<[1], [0], [0], [1], [0, 0, 1, 1], [], []>} : vector<96x32xbf16>, vector<32x64xbf16>, vector<96x64xf32> -> vector<96x64xf32>
    %27 = arith.addf %22, %26 : vector<96x64xf32>
    %c24 = arith.constant 24 : index
    %c0_32 = arith.constant 0 : index
    %28 = vector.load %arg9[%c24, %c0_32] : memref<168x32xbf16, #tpu.memory_space<vmem>>, vector<96x32xbf16>
    %c3 = arith.constant 3 : index
    %c0_33 = arith.constant 0 : index
    %c0_34 = arith.constant 0 : index
    %29 = vector.load %arg6[%c3, %c0_33, %c0_34] : memref<9x32x64xbf16, #tpu.memory_space<vmem>>, vector<1x32x64xbf16>
    %30 = vector.shape_cast %29 : vector<1x32x64xbf16> to vector<32x64xbf16>
    %cst_35 = arith.constant dense<0.000000e+00> : vector<96x64xf32>
    %31 = tpu.matmul %28, %30, %cst_35 {dimension_numbers = #tpu.dot_dimension_numbers<[1], [0], [0], [1], [0, 0, 1, 1], [], []>} : vector<96x32xbf16>, vector<32x64xbf16>, vector<96x64xf32> -> vector<96x64xf32>
    %32 = arith.addf %27, %31 : vector<96x64xf32>
    %c25 = arith.constant 25 : index
    %c0_36 = arith.constant 0 : index
    %33 = vector.load %arg9[%c25, %c0_36] : memref<168x32xbf16, #tpu.memory_space<vmem>>, vector<96x32xbf16>
    %c4 = arith.constant 4 : index
    %c0_37 = arith.constant 0 : index
    %c0_38 = arith.constant 0 : index
    %34 = vector.load %arg6[%c4, %c0_37, %c0_38] : memref<9x32x64xbf16, #tpu.memory_space<vmem>>, vector<1x32x64xbf16>
    %35 = vector.shape_cast %34 : vector<1x32x64xbf16> to vector<32x64xbf16>
    %cst_39 = arith.constant dense<0.000000e+00> : vector<96x64xf32>
    %36 = tpu.matmul %33, %35, %cst_39 {dimension_numbers = #tpu.dot_dimension_numbers<[1], [0], [0], [1], [0, 0, 1, 1], [], []>} : vector<96x32xbf16>, vector<32x64xbf16>, vector<96x64xf32> -> vector<96x64xf32>
    %37 = arith.addf %32, %36 : vector<96x64xf32>
    %c26 = arith.constant 26 : index
    %c0_40 = arith.constant 0 : index
    %38 = vector.load %arg9[%c26, %c0_40] : memref<168x32xbf16, #tpu.memory_space<vmem>>, vector<96x32xbf16>
    %c5 = arith.constant 5 : index
    %c0_41 = arith.constant 0 : index
    %c0_42 = arith.constant 0 : index
    %39 = vector.load %arg6[%c5, %c0_41, %c0_42] : memref<9x32x64xbf16, #tpu.memory_space<vmem>>, vector<1x32x64xbf16>
    %40 = vector.shape_cast %39 : vector<1x32x64xbf16> to vector<32x64xbf16>
    %cst_43 = arith.constant dense<0.000000e+00> : vector<96x64xf32>
    %41 = tpu.matmul %38, %40, %cst_43 {dimension_numbers = #tpu.dot_dimension_numbers<[1], [0], [0], [1], [0, 0, 1, 1], [], []>} : vector<96x32xbf16>, vector<32x64xbf16>, vector<96x64xf32> -> vector<96x64xf32>
    %42 = arith.addf %37, %41 : vector<96x64xf32>
    %c48 = arith.constant 48 : index
    %c0_44 = arith.constant 0 : index
    %43 = vector.load %arg9[%c48, %c0_44] : memref<168x32xbf16, #tpu.memory_space<vmem>>, vector<96x32xbf16>
    %c6 = arith.constant 6 : index
    %c0_45 = arith.constant 0 : index
    %c0_46 = arith.constant 0 : index
    %44 = vector.load %arg6[%c6, %c0_45, %c0_46] : memref<9x32x64xbf16, #tpu.memory_space<vmem>>, vector<1x32x64xbf16>
    %45 = vector.shape_cast %44 : vector<1x32x64xbf16> to vector<32x64xbf16>
    %cst_47 = arith.constant dense<0.000000e+00> : vector<96x64xf32>
    %46 = tpu.matmul %43, %45, %cst_47 {dimension_numbers = #tpu.dot_dimension_numbers<[1], [0], [0], [1], [0, 0, 1, 1], [], []>} : vector<96x32xbf16>, vector<32x64xbf16>, vector<96x64xf32> -> vector<96x64xf32>
    %47 = arith.addf %42, %46 : vector<96x64xf32>
    %c49 = arith.constant 49 : index
    %c0_48 = arith.constant 0 : index
    %48 = vector.load %arg9[%c49, %c0_48] : memref<168x32xbf16, #tpu.memory_space<vmem>>, vector<96x32xbf16>
    %c7 = arith.constant 7 : index
    %c0_49 = arith.constant 0 : index
    %c0_50 = arith.constant 0 : index
    %49 = vector.load %arg6[%c7, %c0_49, %c0_50] : memref<9x32x64xbf16, #tpu.memory_space<vmem>>, vector<1x32x64xbf16>
    %50 = vector.shape_cast %49 : vector<1x32x64xbf16> to vector<32x64xbf16>
    %cst_51 = arith.constant dense<0.000000e+00> : vector<96x64xf32>
    %51 = tpu.matmul %48, %50, %cst_51 {dimension_numbers = #tpu.dot_dimension_numbers<[1], [0], [0], [1], [0, 0, 1, 1], [], []>} : vector<96x32xbf16>, vector<32x64xbf16>, vector<96x64xf32> -> vector<96x64xf32>
    %52 = arith.addf %47, %51 : vector<96x64xf32>
    %c50 = arith.constant 50 : index
    %c0_52 = arith.constant 0 : index
    %53 = vector.load %arg9[%c50, %c0_52] : memref<168x32xbf16, #tpu.memory_space<vmem>>, vector<96x32xbf16>
    %c8 = arith.constant 8 : index
    %c0_53 = arith.constant 0 : index
    %c0_54 = arith.constant 0 : index
    %54 = vector.load %arg6[%c8, %c0_53, %c0_54] : memref<9x32x64xbf16, #tpu.memory_space<vmem>>, vector<1x32x64xbf16>
    %55 = vector.shape_cast %54 : vector<1x32x64xbf16> to vector<32x64xbf16>
    %cst_55 = arith.constant dense<0.000000e+00> : vector<96x64xf32>
    %56 = tpu.matmul %53, %55, %cst_55 {dimension_numbers = #tpu.dot_dimension_numbers<[1], [0], [0], [1], [0, 0, 1, 1], [], []>} : vector<96x32xbf16>, vector<32x64xbf16>, vector<96x64xf32> -> vector<96x64xf32>
    %57 = arith.addf %52, %56 : vector<96x64xf32>
    %c0_56 = arith.constant 0 : index
    %c0_57 = arith.constant 0 : index
    %58 = vector.load %arg7[%c0_56, %c0_57] : memref<1x64xf32, #tpu.memory_space<vmem>>, vector<1x64xf32>
    %59 = vector.broadcast %58 : vector<1x64xf32> to vector<96x64xf32>
    %60 = arith.addf %57, %59 : vector<96x64xf32>
    %cst_58 = arith.constant 0.000000e+00 : f32
    %61 = vector.broadcast %cst_58 : f32 to vector<96x64xf32>
    %62 = arith.maximumf %60, %61 : vector<96x64xf32>
    %63 = arith.truncf %62 : vector<96x64xf32> to vector<96x64xbf16>
    %64 = vector.shape_cast %63 : vector<96x64xbf16> to vector<4x24x64xbf16>
    %65 = vector.extract_strided_slice %64 {offsets = [0, 0, 0], sizes = [4, 16, 64], strides = [1, 1, 1]} : vector<4x24x64xbf16> to vector<4x16x64xbf16>
    %c0_59 = arith.constant 0 : index
    %c0_60 = arith.constant 0 : index
    %c0_61 = arith.constant 0 : index
    %c0_62 = arith.constant 0 : index
    %66 = vector.load %arg8[%c0_59, %c0_60, %c0_61, %c0_62] : memref<1x4x16x64xbf16, #tpu.memory_space<vmem>>, vector<1x4x16x64xbf16>
    %67 = vector.shape_cast %66 : vector<1x4x16x64xbf16> to vector<4x16x64xbf16>
    %68 = vector.shape_cast %65 : vector<4x16x64xbf16> to vector<1x4x16x64xbf16>
    tpu.vector_store %arg8[%c0_59, %c0_60, %c0_61, %c0_62], %68 {strides = array<i32>} : memref<1x4x16x64xbf16, #tpu.memory_space<vmem>>, vector<1x4x16x64xbf16>,
    return
  }
  func.func @transform_0(%arg0: i32, %arg1: i32) -> (i32, i32, i32) {
    %c0_i32 = arith.constant 0 : i32
    %c0_i32_0 = arith.constant 0 : i32
    return %arg0, %arg1, %c0_i32 : i32, i32, i32
  }
  func.func @transform_1(%arg0: i32, %arg1: i32) -> (i32, i32, i32) {
    %c1_i32 = arith.constant 1 : i32
    %0 = arith.addi %arg1, %c1_i32 : i32
    %c4_i32 = arith.constant 4 : i32
    %1 = arith.muli %0, %c4_i32 : i32
    %c0_i32 = arith.constant 0 : i32
    %c0_i32_0 = arith.constant 0 : i32
    return %arg0, %1, %c0_i32 : i32, i32, i32
  }
  func.func @transform_2(%arg0: i32, %arg1: i32) -> (i32, i32, i32) {
    %c1_i32 = arith.constant 1 : i32
    %0 = arith.addi %arg1, %c1_i32 : i32
    %c4_i32 = arith.constant 4 : i32
    %1 = arith.muli %0, %c4_i32 : i32
    %c1_i32_0 = arith.constant 1 : i32
    %2 = arith.addi %1, %c1_i32_0 : i32
    %c0_i32 = arith.constant 0 : i32
    %c0_i32_1 = arith.constant 0 : i32
    return %arg0, %2, %c0_i32 : i32, i32, i32
  }
  func.func @transform_3(%arg0: i32, %arg1: i32) -> (i32, i32, i32) {
    %c1_i32 = arith.constant 1 : i32
    %0 = arith.addi %arg1, %c1_i32 : i32
    %c4_i32 = arith.constant 4 : i32
    %1 = arith.muli %0, %c4_i32 : i32
    %c2_i32 = arith.constant 2 : i32
    %2 = arith.addi %1, %c2_i32 : i32
    %c0_i32 = arith.constant 0 : i32
    %c0_i32_0 = arith.constant 0 : i32
    return %arg0, %2, %c0_i32 : i32, i32, i32
  }
  func.func @transform_4(%arg0: i32, %arg1: i32) -> (i32, i32, i32) {
    %c0_i32 = arith.constant 0 : i32
    %c0_i32_0 = arith.constant 0 : i32
    %c0_i32_1 = arith.constant 0 : i32
    %c0_i32_2 = arith.constant 0 : i32
    return %c0_i32, %c0_i32_0, %c0_i32_1 : i32, i32, i32
  }
  func.func @transform_5(%arg0: i32, %arg1: i32) -> (i32, i32) {
    %c0_i32 = arith.constant 0 : i32
    %c0_i32_0 = arith.constant 0 : i32
    %c0_i32_1 = arith.constant 0 : i32
    return %c0_i32, %c0_i32_0 : i32, i32
  }
  func.func @transform_6(%arg0: i32, %arg1: i32) -> (i32, i32, i32, i32) {
    %c0_i32 = arith.constant 0 : i32
    %c0_i32_0 = arith.constant 0 : i32
    %c0_i32_1 = arith.constant 0 : i32
    return %arg0, %arg1, %c0_i32, %c0_i32_0 : i32, i32, i32, i32
  }
}

</mosaic_0001>

<llo_original>
// kernel: tpu_custom_call.1
$region0: #{tpu_custom_call.1}
  #allocation0 [shape = 'u32[]', space=smem, size = 0x4, offset = 0x4, fixed_abs, tag = 'smem constant byte address 0x4 - core index']
  #allocation1 [shape = 'u32[144,128]{1,0:T(1,128)}', space=vmem, size = 0x12000, scoped, tag = 'internal scratch']
  #allocation2 [shape = 'bf16[168,32]{1,0:T(8,128)(2,1)}', space=vmem, size = 0xa800, scoped, tag = 'scratch operand']
  %s0 = inlined_call_operand.vmem [shape: bf16[2,456,32], index: 0, kind: input, shape index: {}]
  %s1 = inlined_call_operand.vmem [shape: bf16[2,456,32], index: 1, kind: input, shape index: {}]
  %s2 = inlined_call_operand.vmem [shape: bf16[2,456,32], index: 2, kind: input, shape index: {}]
  %s3 = inlined_call_operand.vmem [shape: bf16[2,456,32], index: 3, kind: input, shape index: {}]
  %s4 = inlined_call_operand.vmem [shape: bf16[9,32,64], index: 4, kind: input, shape index: {}]
  %s5 = inlined_call_operand.vmem [shape: f32[1,64], index: 5, kind: input, shape index: {}]
  %s6 = inlined_call_operand.hbm [shape: bf16[2,16,16,64], index: 6, kind: output, shape index: {}]
  %s7 = sld [smem:[#allocation0]]
  $region57: #{tpu_custom_call.1} parent=0
    _
  %s9 = ssub.s32 1, %s7
  %s10 = scalar_select 0, %s9, %s7
  $region1: #{tpu_custom_call.1} parent=0
    #allocation3 [shape = 'u8[32768]{0}', space=vmem, size = 0x8000, scoped, tag = 'output window, operand 0']
    #allocation4 [shape = 's32[2]{0}', space=sflag, size = 0x8, scoped, tag = 'scoped memory for tpu_custom_call.1']
    %11 = vsyncpa [#allocation4], 0
    %s12 = scalar_lea.sflag [#allocation4], 1
    %13 = vsyncpa %s12, 0
    loop: start=0, step=1, limit=10
    $region2: #{tpu_custom_call.1} parent=1 // loop_pre_header
      _
    $region3: #{tpu_custom_call.1} parent=1 // loop_header
      %s15 = sphi 0, %s19
      %p16 = scmp.ge.s32.totalorder %s15, 10
      %s22 = sphi 0, %s34
      %s23 = sphi 0, %s30
      %s24 = sphi 0, %s22
      %s25 = sphi 0, %s23
      %s26 = sphi 0, %s24
      %s27 = sphi 0, %s25
      %s39 = sphi 0, %s41
      %s42 = sphi 0, %s39
      %s43 = sphi 0, %s42
      %s59 = sphi 0, %s43
      %s71 = sphi 0, %s73
      %s74 = sphi 0, %s71
      %s75 = sphi 0, %s74
      %s91 = sphi 0, %s75
      %s105 = sphi 0, %s107
      %s108 = sphi 0, %s105
      %s109 = sphi 0, %s108
      %s125 = sphi 0, %s109
      %s139 = sphi 0, %s141
      %s142 = sphi 0, %s139
      %s143 = sphi 0, %s142
      %s159 = sphi 0, %s143
      %s163 = sphi 0, %s163
      %s165 = sphi 0, %s163
      %s166 = sphi 0, %s165
      %s180 = sphi 0, %s166
      %s184 = sphi 0, %s184
      %s186 = sphi 0, %s184
      %s187 = sphi 0, %s186
      %s201 = sphi 0, %s187
      %s209 = sphi 0, %s211
      %s212 = sphi 0, %s209
      %s213 = sphi 0, %s212
      %s229 = sphi 0, %s213
    $region4: #{tpu_custom_call.1} parent=1 // loop_header_branch
      %18 = sbr.rel (%p16) target = $region8
    $region5: #{tpu_custom_call.1} parent=1 // loop_body
      %s20 = ssub.s32 %s15, 1
      %s21 = ssub.s32 %s15, 2
      %s28 = sadd.s32 1, %s23
      %p29 = scmp.ge.s32.totalorder %s28, 4
      %s30 = scalar_select %p29, 0, %s28
      %s31 = sadd.s32 1, %s22
      %s32 = scalar_select %p29, %s31, %s22
      %p33 = scmp.ge.s32.totalorder %s32, 2
      %s34 = scalar_select %p33, 0, %s32
      %s35 = ssub.s32 %s22, %s34
      %s36 = ssub.s32 %s23, %s30
      %s37 = sor.u32 %s35, %s36
      %p38 = scmp.eq.s32.totalorder %s37, 0
      %s40 = sadd.s32 %s39, 1
      %s41 = scalar_select %p38, %s39, %s40
      %p44 = pneg %p38
      %p45 = scmp.eq.s32.totalorder %s15, 7
      %p46 = por %p44, %p45
      %p47 = scmp.ne.s32.totalorder %s39, %s42
      %p48 = scmp.eq.s32.totalorder %s15, 0
      %p49 = por %p47, %p48
      %p50 = scmp.ne.s32.totalorder %s39, %s42
      %p51 = scmp.eq.s32.totalorder %s20, 7
      %p52 = por %p50, %p51
      %p53 = scmp.ne.s32.totalorder %s42, %s43
      %p54 = scmp.eq.s32.totalorder %s20, 0
      %p55 = por %p53, %p54
      %p56 = scmp.ne.s32.totalorder %s42, %s43
      %p57 = scmp.eq.s32.totalorder %s21, 7
      %p58 = por %p56, %p57
      %p60 = scmp.ne.s32.totalorder %s43, %s59
      %p61 = scmp.eq.s32.totalorder %s21, 0
      %p62 = por %p60, %p61
      %s63 = sadd.s32 %s23, 1
      %s64 = smul.u32 %s63, 4
      %s65 = sadd.s32 %s30, 1
      %s66 = smul.u32 %s65, 4
      %s67 = ssub.s32 %s22, %s34
      %s68 = ssub.s32 %s64, %s66
      %s69 = sor.u32 %s67, %s68
      %p70 = scmp.eq.s32.totalorder %s69, 0
      %s72 = sadd.s32 %s71, 1
      %s73 = scalar_select %p70, %s71, %s72
      %p76 = pneg %p70
      %p77 = scmp.eq.s32.totalorder %s15, 7
      %p78 = por %p76, %p77
      %p79 = scmp.ne.s32.totalorder %s71, %s74
      %p80 = scmp.eq.s32.totalorder %s15, 0
      %p81 = por %p79, %p80
      %p82 = scmp.ne.s32.totalorder %s71, %s74
      %p83 = scmp.eq.s32.totalorder %s20, 7
      %p84 = por %p82, %p83
      %p85 = scmp.ne.s32.totalorder %s74, %s75
      %p86 = scmp.eq.s32.totalorder %s20, 0
      %p87 = por %p85, %p86
      %p88 = scmp.ne.s32.totalorder %s74, %s75
      %p89 = scmp.eq.s32.totalorder %s21, 7
      %p90 = por %p88, %p89
      %p92 = scmp.ne.s32.totalorder %s75, %s91
      %p93 = scmp.eq.s32.totalorder %s21, 0
      %p94 = por %p92, %p93
      %s95 = sadd.s32 %s23, 1
      %s96 = smul.u32 %s95, 4
      %s97 = sadd.s32 %s96, 1
      %s98 = sadd.s32 %s30, 1
      %s99 = smul.u32 %s98, 4
      %s100 = sadd.s32 %s99, 1
      %s101 = ssub.s32 %s22, %s34
      %s102 = ssub.s32 %s97, %s100
      %s103 = sor.u32 %s101, %s102
      %p104 = scmp.eq.s32.totalorder %s103, 0
      %s106 = sadd.s32 %s105, 1
      %s107 = scalar_select %p104, %s105, %s106
      %p110 = pneg %p104
      %p111 = scmp.eq.s32.totalorder %s15, 7
      %p112 = por %p110, %p111
      %p113 = scmp.ne.s32.totalorder %s105, %s108
      %p114 = scmp.eq.s32.totalorder %s15, 0
      %p115 = por %p113, %p114
      %p116 = scmp.ne.s32.totalorder %s105, %s108
      %p117 = scmp.eq.s32.totalorder %s20, 7
      %p118 = por %p116, %p117
      %p119 = scmp.ne.s32.totalorder %s108, %s109
      %p120 = scmp.eq.s32.totalorder %s20, 0
      %p121 = por %p119, %p120
      %p122 = scmp.ne.s32.totalorder %s108, %s109
      %p123 = scmp.eq.s32.totalorder %s21, 7
      %p124 = por %p122, %p123
      %p126 = scmp.ne.s32.totalorder %s109, %s125
      %p127 = scmp.eq.s32.totalorder %s21, 0
      %p128 = por %p126, %p127
      %s129 = sadd.s32 %s23, 1
      %s130 = smul.u32 %s129, 4
      %s131 = sadd.s32 %s130, 2
      %s132 = sadd.s32 %s30, 1
      %s133 = smul.u32 %s132, 4
      %s134 = sadd.s32 %s133, 2
      %s135 = ssub.s32 %s22, %s34
      %s136 = ssub.s32 %s131, %s134
      %s137 = sor.u32 %s135, %s136
      %p138 = scmp.eq.s32.totalorder %s137, 0
      %s140 = sadd.s32 %s139, 1
      %s141 = scalar_select %p138, %s139, %s140
      %p144 = pneg %p138
      %p145 = scmp.eq.s32.totalorder %s15, 7
      %p146 = por %p144, %p145
      %p147 = scmp.ne.s32.totalorder %s139, %s142
      %p148 = scmp.eq.s32.totalorder %s15, 0
      %p149 = por %p147, %p148
      %p150 = scmp.ne.s32.totalorder %s139, %s142
      %p151 = scmp.eq.s32.totalorder %s20, 7
      %p152 = por %p150, %p151
      %p153 = scmp.ne.s32.totalorder %s142, %s143
      %p154 = scmp.eq.s32.totalorder %s20, 0
      %p155 = por %p153, %p154
      %p156 = scmp.ne.s32.totalorder %s142, %s143
      %p157 = scmp.eq.s32.totalorder %s21, 7
      %p158 = por %p156, %p157
      %p160 = scmp.ne.s32.totalorder %s143, %s159
      %p161 = scmp.eq.s32.totalorder %s21, 0
      %p162 = por %p160, %p161
      %s164 = sadd.s32 %s163, 1
      %p167 = scmp.eq.s32.totalorder %s15, 7
      %p168 = scmp.ne.s32.totalorder %s163, %s165
      %p169 = scmp.eq.s32.totalorder %s15, 0
      %p170 = por %p168, %p169
      %p171 = scmp.ne.s32.totalorder %s163, %s165
      %p172 = scmp.eq.s32.totalorder %s20, 7
      %p173 = por %p171, %p172
      %p174 = scmp.ne.s32.totalorder %s165, %s166
      %p175 = scmp.eq.s32.totalorder %s20, 0
      %p176 = por %p174, %p175
      %p177 = scmp.ne.s32.totalorder %s165, %s166
      %p178 = scmp.eq.s32.totalorder %s21, 7
      %p179 = por %p177, %p178
      %p181 = scmp.ne.s32.totalorder %s166, %s180
      %p182 = scmp.eq.s32.totalorder %s21, 0
      %p183 = por %p181, %p182
      %s185 = sadd.s32 %s184, 1
      %p188 = scmp.eq.s32.totalorder %s15, 7
      %p189 = scmp.ne.s32.totalorder %s184, %s186
      %p190 = scmp.eq.s32.totalorder %s15, 0
      %p191 = por %p189, %p190
      %p192 = scmp.ne.s32.totalorder %s184, %s186
      %p193 = scmp.eq.s32.totalorder %s20, 7
      %p194 = por %p192, %p193
      %p195 = scmp.ne.s32.totalorder %s186, %s187
      %p196 = scmp.eq.s32.totalorder %s20, 0
      %p197 = por %p195, %p196
      %p198 = scmp.ne.s32.totalorder %s186, %s187
      %p199 = scmp.eq.s32.totalorder %s21, 7
      %p200 = por %p198, %p199
      %p202 = scmp.ne.s32.totalorder %s187, %s201
      %p203 = scmp.eq.s32.totalorder %s21, 0
      %p204 = por %p202, %p203
      %s205 = ssub.s32 %s22, %s34
      %s206 = ssub.s32 %s23, %s30
      %s207 = sor.u32 %s205, %s206
      %p208 = scmp.eq.s32.totalorder %s207, 0
      %s210 = sadd.s32 %s209, 1
      %s211 = scalar_select %p208, %s209, %s210
      %p214 = pneg %p208
      %p215 = scmp.eq.s32.totalorder %s15, 7
      %p216 = por %p214, %p215
      %p217 = scmp.ne.s32.totalorder %s209, %s212
      %p218 = scmp.eq.s32.totalorder %s15, 0
      %p219 = por %p217, %p218
      %p220 = scmp.ne.s32.totalorder %s209, %s212
      %p221 = scmp.eq.s32.totalorder %s20, 7
      %p222 = por %p220, %p221
      %p223 = scmp.ne.s32.totalorder %s212, %s213
      %p224 = scmp.eq.s32.totalorder %s20, 0
      %p225 = por %p223, %p224
      %p226 = scmp.ne.s32.totalorder %s212, %s213
      %p227 = scmp.eq.s32.totalorder %s21, 7
      %p228 = por %p226, %p227
      %p230 = scmp.ne.s32.totalorder %s213, %s229
      %p231 = scmp.eq.s32.totalorder %s21, 0
      %p232 = por %p230, %p231
      %p233 = scmp.le.s32.totalorder 1, %s15
      %p234 = scmp.lt.s32.totalorder %s15, 9
      %p235 = pnand %p233, %p234
      %p236 = pneg %p235
      // Predicated region
      $region9: #{tpu_custom_call.1} parent=5 // pred_check
        _
      $region10: #{tpu_custom_call.1} parent=5 // pred_check_branch
        %238 = sbr.rel (%p235) target = $region12
      $region11: #{tpu_custom_call.1} parent=5 // pred_region
        %s239 = ssub.s32 %s15, 1
        // Predicated region
        $region13: #{tpu_custom_call.1} parent=11 // pred_check
          %p240 = pneg %p176
        $region14: #{tpu_custom_call.1} parent=11 // pred_check_branch
          %242 = sbr.rel (%p240) target = $region16
        $region15: #{tpu_custom_call.1} parent=11 // pred_region
          _
        $region16: #{tpu_custom_call.1} parent=11 // pred_fallthru
          _
        // Predicated region
        $region17: #{tpu_custom_call.1} parent=11 // pred_check
          %p243 = pneg %p197
        $region18: #{tpu_custom_call.1} parent=11 // pred_check_branch
          %245 = sbr.rel (%p243) target = $region20
        $region19: #{tpu_custom_call.1} parent=11 // pred_region
          _
        $region20: #{tpu_custom_call.1} parent=11 // pred_fallthru
          _
      $region12: #{tpu_custom_call.1} parent=5 // pred_fallthru
        _
      %p246 = scmp.lt.s32.totalorder %s15, 8
      // Predicated region
      $region21: #{tpu_custom_call.1} parent=5 // pred_check
        %p247 = pneg %p246
      $region22: #{tpu_custom_call.1} parent=5 // pred_check_branch
        %249 = sbr.rel (%p247) target = $region24
      $region23: #{tpu_custom_call.1} parent=5 // pred_region
        // Predicated region
        $region25: #{tpu_custom_call.1} parent=23 // pred_check
          %p250 = pneg %p49
        $region26: #{tpu_custom_call.1} parent=23 // pred_check_branch
          %252 = sbr.rel (%p250) target = $region28
        $region27: #{tpu_custom_call.1} parent=23 // pred_region
          %s253 = smul.u32 12, %s23
          %s254 = ssub.s32 57, %s253
          %p255 = scmp.lt.s32.totalorder %s254, 12
          %s256 = scalar_select %p255, %s254, 12
          %s257 = smul.u32 64, %s256
          %p258 = scmp.lt.s32.totalorder %s22, 1
          %s259 = scalar_select %p258, %s22, 1
          %p260 = scmp.lt.s32.totalorder %s253, 56
          %s261 = scalar_select %p260, %s253, 56
          %s262 = smul.addr %s259, 57
          %s263 = sadd.s32 %s261, %s262
          %s264 = smul.addr %s263, 4
          %s265 = scalar_lea.vmem %s0, %s264
          %s266 = smul.u32 12, %s23
          %s267 = ssub.s32 57, %s266
          %p268 = scmp.lt.s32.totalorder %s267, 12
          %s269 = scalar_select %p268, %s267, 12
          %s270 = smul.u32 64, %s269
        $region28: #{tpu_custom_call.1} parent=23 // pred_fallthru
          _
        // Predicated region
        $region29: #{tpu_custom_call.1} parent=23 // pred_check
          %p271 = pneg %p81
        $region30: #{tpu_custom_call.1} parent=23 // pred_check_branch
          %273 = sbr.rel (%p271) target = $region32
        $region31: #{tpu_custom_call.1} parent=23 // pred_region
          %s274 = sadd.s32 %s23, 1
          %s275 = smul.u32 %s274, 4
          %s276 = smul.u32 3, %s275
          %p277 = scmp.lt.s32.totalorder %s22, 1
          %s278 = scalar_select %p277, %s22, 1
          %p279 = scmp.lt.s32.totalorder %s276, 56
          %s280 = scalar_select %p279, %s276, 56
          %s281 = smul.addr %s278, 57
          %s282 = sadd.s32 %s280, %s281
          %s283 = smul.addr %s282, 4
          %s284 = scalar_lea.vmem %s1, %s283
          %s285 = sadd.s32 %s23, 1
          %s286 = smul.u32 %s285, 4
          %s287 = smul.u32 3, %s286
        $region32: #{tpu_custom_call.1} parent=23 // pred_fallthru
          _
        // Predicated region
        $region33: #{tpu_custom_call.1} parent=23 // pred_check
          %p288 = pneg %p115
        $region34: #{tpu_custom_call.1} parent=23 // pred_check_branch
          %290 = sbr.rel (%p288) target = $region36
        $region35: #{tpu_custom_call.1} parent=23 // pred_region
          %s291 = sadd.s32 %s23, 1
          %s292 = smul.u32 %s291, 4
          %s293 = sadd.s32 %s292, 1
          %s294 = smul.u32 3, %s293
          %p295 = scmp.lt.s32.totalorder %s22, 1
          %s296 = scalar_select %p295, %s22, 1
          %p297 = scmp.lt.s32.totalorder %s294, 56
          %s298 = scalar_select %p297, %s294, 56
          %s299 = smul.addr %s296, 57
          %s300 = sadd.s32 %s298, %s299
          %s301 = smul.addr %s300, 4
          %s302 = scalar_lea.vmem %s2, %s301
          %s303 = sadd.s32 %s23, 1
          %s304 = smul.u32 %s303, 4
          %s305 = sadd.s32 %s304, 1
          %s306 = smul.u32 3, %s305
        $region36: #{tpu_custom_call.1} parent=23 // pred_fallthru
          _
        // Predicated region
        $region37: #{tpu_custom_call.1} parent=23 // pred_check
          %p307 = pneg %p149
        $region38: #{tpu_custom_call.1} parent=23 // pred_check_branch
          %309 = sbr.rel (%p307) target = $region40
        $region39: #{tpu_custom_call.1} parent=23 // pred_region
          %s310 = sadd.s32 %s23, 1
          %s311 = smul.u32 %s310, 4
          %s312 = sadd.s32 %s311, 2
          %s313 = smul.u32 3, %s312
          %p314 = scmp.lt.s32.totalorder %s22, 1
          %s315 = scalar_select %p314, %s22, 1
          %p316 = scmp.lt.s32.totalorder %s313, 56
          %s317 = scalar_select %p316, %s313, 56
          %s318 = smul.addr %s315, 57
          %s319 = sadd.s32 %s317, %s318
          %s320 = smul.addr %s319, 4
          %s321 = scalar_lea.vmem %s3, %s320
          %s322 = sadd.s32 %s23, 1
          %s323 = smul.u32 %s322, 4
          %s324 = sadd.s32 %s323, 2
          %s325 = smul.u32 3, %s324
        $region40: #{tpu_custom_call.1} parent=23 // pred_fallthru
          _
      $region24: #{tpu_custom_call.1} parent=5 // pred_fallthru
        _
      %p326 = scmp.le.s32.totalorder 1, %s15
      %p327 = scmp.lt.s32.totalorder %s15, 9
      %p328 = pnand %p326, %p327
      %p329 = pneg %p328
      // Predicated region
      $region41: #{tpu_custom_call.1} parent=5 // pred_check
        _
      $region42: #{tpu_custom_call.1} parent=5 // pred_check_branch
        %331 = sbr.rel (%p328) target = $region44
      $region43: #{tpu_custom_call.1} parent=5 // pred_region
        %s332 = ssub.s32 %s15, 1
        %s333 = smul.u32 12, %s25
        %s334 = ssub.s32 57, %s333
        %p335 = scmp.lt.s32.totalorder %s334, 12
        %s336 = scalar_select %p335, %s334, 12
        %s337 = smul.u32 64, %s336
        %p338 = scmp.lt.s32.totalorder %s24, 1
        %s339 = scalar_select %p338, %s24, 1
        %p340 = scmp.lt.s32.totalorder %s333, 56
        %s341 = scalar_select %p340, %s333, 56
        %s342 = smul.addr %s339, 57
        %s343 = sadd.s32 %s341, %s342
        %s344 = smul.addr %s343, 4
        %s345 = scalar_lea.vmem %s0, %s344
        %p346 = pneg %p55
        %p347 = pneg %p52
        %s348 = sadd.s32 %s25, 1
        %s349 = smul.u32 %s348, 4
        %s350 = smul.u32 3, %s349
        %p351 = scmp.lt.s32.totalorder %s24, 1
        %s352 = scalar_select %p351, %s24, 1
        %p353 = scmp.lt.s32.totalorder %s350, 56
        %s354 = scalar_select %p353, %s350, 56
        %s355 = smul.addr %s352, 57
        %s356 = sadd.s32 %s354, %s355
        %s357 = smul.addr %s356, 4
        %s358 = scalar_lea.vmem %s1, %s357
        %p359 = pneg %p87
        %p360 = pneg %p84
        %s361 = sadd.s32 %s25, 1
        %s362 = smul.u32 %s361, 4
        %s363 = sadd.s32 %s362, 1
        %s364 = smul.u32 3, %s363
        %p365 = scmp.lt.s32.totalorder %s24, 1
        %s366 = scalar_select %p365, %s24, 1
        %p367 = scmp.lt.s32.totalorder %s364, 56
        %s368 = scalar_select %p367, %s364, 56
        %s369 = smul.addr %s366, 57
        %s370 = sadd.s32 %s368, %s369
        %s371 = smul.addr %s370, 4
        %s372 = scalar_lea.vmem %s2, %s371
        %p373 = pneg %p121
        %p374 = pneg %p118
        %s375 = sadd.s32 %s25, 1
        %s376 = smul.u32 %s375, 4
        %s377 = sadd.s32 %s376, 2
        %s378 = smul.u32 3, %s377
        %p379 = scmp.lt.s32.totalorder %s24, 1
        %s380 = scalar_select %p379, %s24, 1
        %p381 = scmp.lt.s32.totalorder %s378, 56
        %s382 = scalar_select %p381, %s378, 56
        %s383 = smul.addr %s380, 57
        %s384 = sadd.s32 %s382, %s383
        %s385 = smul.addr %s384, 4
        %s386 = scalar_lea.vmem %s3, %s385
        %p387 = pneg %p155
        %p388 = pneg %p152
        %p389 = pneg %p176
        %p390 = pneg %p173
        %p391 = pneg %p197
        %p392 = pneg %p194
        %p393 = pneg %p225
        %p394 = pneg %p222
        %s395 = sand.u32 %s212, 1
        %s396 = scalar_lea.sflag [#allocation4], %s395
        %s397 = sand.u32 %s212, 1
        %s398 = smul.addr %s397, 32
        %s399 = scalar_lea.vmem [#allocation3], %s398
        %s400 = smul.u32 12, %s25
        %s401 = ssub.s32 57, %s400
        %p402 = scmp.lt.s32.totalorder %s401, 12
        %s403 = scalar_select %p402, %s401, 12
        %s404 = smul.u32 64, %s403
        %p405 = scmp.lt.s32.totalorder %s24, 1
        %s406 = scalar_select %p405, %s24, 1
        %p407 = scmp.lt.s32.totalorder %s400, 56
        %s408 = scalar_select %p407, %s400, 56
        %s409 = smul.addr %s406, 57
        %s410 = sadd.s32 %s408, %s409
        %s411 = smul.addr %s410, 4
        %s412 = scalar_lea.vmem %s0, %s411
        %s413 = smul.u32 12, %s25
        %s414 = ssub.s32 57, %s413
        %p415 = scmp.lt.s32.totalorder %s414, 12
        %s416 = scalar_select %p415, %s414, 12
        %s417 = smul.u32 64, %s416
        %s418 = sadd.s32 %s25, 1
        %s419 = smul.u32 %s418, 4
        %s420 = smul.u32 3, %s419
        %p421 = scmp.lt.s32.totalorder %s24, 1
        %s422 = scalar_select %p421, %s24, 1
        %p423 = scmp.lt.s32.totalorder %s420, 56
        %s424 = scalar_select %p423, %s420, 56
        %s425 = smul.addr %s422, 57
        %s426 = sadd.s32 %s424, %s425
        %s427 = smul.addr %s426, 4
        %s428 = scalar_lea.vmem %s1, %s427
        %s429 = sadd.s32 %s25, 1
        %s430 = smul.u32 %s429, 4
        %s431 = smul.u32 3, %s430
        %s432 = sadd.s32 %s25, 1
        %s433 = smul.u32 %s432, 4
        %s434 = sadd.s32 %s433, 1
        %s435 = smul.u32 3, %s434
        %p436 = scmp.lt.s32.totalorder %s24, 1
        %s437 = scalar_select %p436, %s24, 1
        %p438 = scmp.lt.s32.totalorder %s435, 56
        %s439 = scalar_select %p438, %s435, 56
        %s440 = smul.addr %s437, 57
        %s441 = sadd.s32 %s439, %s440
        %s442 = smul.addr %s441, 4
        %s443 = scalar_lea.vmem %s2, %s442
        %s444 = sadd.s32 %s25, 1
        %s445 = smul.u32 %s444, 4
        %s446 = sadd.s32 %s445, 1
        %s447 = smul.u32 3, %s446
        %s448 = sadd.s32 %s25, 1
        %s449 = smul.u32 %s448, 4
        %s450 = sadd.s32 %s449, 2
        %s451 = smul.u32 3, %s450
        %p452 = scmp.lt.s32.totalorder %s24, 1
        %s453 = scalar_select %p452, %s24, 1
        %p454 = scmp.lt.s32.totalorder %s451, 56
        %s455 = scalar_select %p454, %s451, 56
        %s456 = smul.addr %s453, 57
        %s457 = sadd.s32 %s455, %s456
        %s458 = smul.addr %s457, 4
        %s459 = scalar_lea.vmem %s3, %s458
        %s460 = sadd.s32 %s25, 1
        %s461 = smul.u32 %s460, 4
        %s462 = sadd.s32 %s461, 2
        %s463 = smul.u32 3, %s462
        %s464 = smul.u32 4, %s25
        %v466 = vld [vmem:[%s412] sm:$0xf]
        %v467 = vld [vmem:[%s412 + $0x4] sm:$0xf]
        %v468 = vld [vmem:[%s412 + $0x8] sm:$0xf]
        %v469 = vld [vmem:[%s412 + $0xc] sm:$0xf]
        %v470 = vld [vmem:[%s412 + $0x10] sm:$0xf]
        %v471 = vld [vmem:[%s412 + $0x14] sm:$0xf]
        %v472 = vld [vmem:[%s412 + $0x18] sm:$0xf]
        %v473 = vld [vmem:[%s412 + $0x1c] sm:$0xf]
        %v474 = vld [vmem:[%s412 + $0x20] sm:$0xf]
        %v475 = vld [vmem:[%s412 + $0x24] sm:$0xf]
        %v476 = vld [vmem:[%s412 + $0x28] sm:$0xf]
        %v477 = vld [vmem:[%s412 + $0x2c] sm:$0xf]
        %vm478 = vcmask 257024
        %479 = vst.msk [vmem:[#allocation2] sm:$0xf] %vm478, %v466
        %480 = vst.msk [vmem:[#allocation2 + $0x4] sm:$0xf] %vm478, %v467
        %481 = vst.msk [vmem:[#allocation2 + $0x8] sm:$0xf] %vm478, %v468
        %482 = vst.msk [vmem:[#allocation2 + $0xc] sm:$0xf] %vm478, %v469
        %483 = vst.msk [vmem:[#allocation2 + $0x10] sm:$0xf] %vm478, %v470
        %484 = vst.msk [vmem:[#allocation2 + $0x14] sm:$0xf] %vm478, %v471
        %485 = vst.msk [vmem:[#allocation2 + $0x18] sm:$0xf] %vm478, %v472
        %486 = vst.msk [vmem:[#allocation2 + $0x1c] sm:$0xf] %vm478, %v473
        %487 = vst.msk [vmem:[#allocation2 + $0x20] sm:$0xf] %vm478, %v474
        %488 = vst.msk [vmem:[#allocation2 + $0x24] sm:$0xf] %vm478, %v475
        %489 = vst.msk [vmem:[#allocation2 + $0x28] sm:$0xf] %vm478, %v476
        %490 = vst.msk [vmem:[#allocation2 + $0x2c] sm:$0xf] %vm478, %v477
        %v491 = vld [vmem:[%s428] sm:$0xf]
        %v492 = vld [vmem:[%s428 + $0x4] sm:$0xf]
        %v493 = vld [vmem:[%s428 + $0x8] sm:$0xf]
        %494 = vst.msk [vmem:[#allocation2 + $0x30] sm:$0xf] %vm478, %v491
        %495 = vst.msk [vmem:[#allocation2 + $0x34] sm:$0xf] %vm478, %v492
        %496 = vst.msk [vmem:[#allocation2 + $0x38] sm:$0xf] %vm478, %v493
        %v497 = vld [vmem:[%s443] sm:$0xf]
        %v498 = vld [vmem:[%s443 + $0x4] sm:$0xf]
        %v499 = vld [vmem:[%s443 + $0x8] sm:$0xf]
        %500 = vst.msk [vmem:[#allocation2 + $0x3c] sm:$0xf] %vm478, %v497
        %501 = vst.msk [vmem:[#allocation2 + $0x40] sm:$0xf] %vm478, %v498
        %502 = vst.msk [vmem:[#allocation2 + $0x44] sm:$0xf] %vm478, %v499
        %v503 = vld [vmem:[%s459] sm:$0xf]
        %v504 = vld [vmem:[%s459 + $0x4] sm:$0xf]
        %v505 = vld [vmem:[%s459 + $0x8] sm:$0xf]
        %506 = vst.msk [vmem:[#allocation2 + $0x48] sm:$0xf] %vm478, %v503
        %507 = vst.msk [vmem:[#allocation2 + $0x4c] sm:$0xf] %vm478, %v504
        %508 = vst.msk [vmem:[#allocation2 + $0x50] sm:$0xf] %vm478, %v505
        %v509 = vld [vmem:[#allocation2] sm:$0xf]
        %v510 = vld [vmem:[#allocation2 + $0x4] sm:$0xf]
        %v511 = vld [vmem:[#allocation2 + $0x8] sm:$0xf]
        %v512 = vld [vmem:[#allocation2 + $0xc] sm:$0xf]
        %v513 = vld [vmem:[#allocation2 + $0x10] sm:$0xf]
        %v514 = vld [vmem:[#allocation2 + $0x14] sm:$0xf]
        %v515 = vld [vmem:[#allocation2 + $0x18] sm:$0xf]
        %v516 = vld [vmem:[#allocation2 + $0x1c] sm:$0xf]
        %v517 = vld [vmem:[#allocation2 + $0x20] sm:$0xf]
        %v518 = vld [vmem:[#allocation2 + $0x24] sm:$0xf]
        %v519 = vld [vmem:[#allocation2 + $0x28] sm:$0xf]
        %v520 = vld [vmem:[#allocation2 + $0x2c] sm:$0xf]
        %v521 = vld [vmem:[%s4] sm:$0xf]
        %v522 = vld [vmem:[%s4 + $0x4] sm:$0xf]
        %v523 = vld [vmem:[%s4 + $0x8] sm:$0xf]
        %v524 = vld [vmem:[%s4 + $0xc] sm:$0xf]
        %v525 = vld [vmem:[#allocation2 + $0x30] sm:$0x1]
        %s526 = scalar_lea.vmem %s4, 16
        %v527 = vld [vmem:[%s526] sm:$0xf]
        %v528 = vld [vmem:[%s526 + $0x4] sm:$0xf]
        %v529 = vld [vmem:[%s526 + $0x8] sm:$0xf]
        %v530 = vld [vmem:[%s526 + $0xc] sm:$0xf]
        %v544 = vunpack.c.l.b16 %v509
        %v545 = vunpack.c.l.b16 %v510
        %v546 = vunpack.c.l.b16 %v511
        %v547 = vunpack.c.l.b16 %v512
        %v548 = vunpack.c.l.b16 %v513
        %v549 = vunpack.c.l.b16 %v514
        %v550 = vunpack.c.l.b16 %v515
        %v551 = vunpack.c.l.b16 %v516
        %v552 = vunpack.c.l.b16 %v517
        %v553 = vunpack.c.l.b16 %v518
        %v554 = vunpack.c.l.b16 %v519
        %v555 = vunpack.c.l.b16 %v520
        %v556 = vunpack.c.l.b16 %v525
        %v557 = vpack.c.b16 %v545, %v544
        %v558 = vpack.c.b16 %v547, %v546
        %v559 = vpack.c.b16 %v549, %v548
        %v560 = vpack.c.b16 %v551, %v550
        %v561 = vpack.c.b16 %v553, %v552
        %v562 = vpack.c.b16 %v555, %v554
        %v563 = vpack.c.b16 %v556, %v556
        %vm564 = vsmask.f32 7424
        %v566 = vshrl.u32 %v557, 16
        %v568 = vshll.u32 %v557, 16
        %v570 = vrot.slane %v568, 1
        %v571 = vor.u32 %v566, %v570
        %v573 = vshll.u32 %v558, 16
        %v575 = vrot.slane %v573, 1
        %v576 = vsel %vm564, %v571, %v575
        %v577 = vshrl.u32 %v558, 16
        %v579 = vor.u32 %v577, %v575
        %v581 = vshll.u32 %v559, 16
        %v583 = vrot.slane %v581, 1
        %v584 = vsel %vm564, %v579, %v583
        %v585 = vshrl.u32 %v559, 16
        %v587 = vor.u32 %v585, %v583
        %v589 = vshll.u32 %v560, 16
        %v591 = vrot.slane %v589, 1
        %v592 = vsel %vm564, %v587, %v591
        %v593 = vshrl.u32 %v560, 16
        %v595 = vor.u32 %v593, %v591
        %v597 = vshll.u32 %v561, 16
        %v599 = vrot.slane %v597, 1
        %v600 = vsel %vm564, %v595, %v599
        %v601 = vshrl.u32 %v561, 16
        %v603 = vor.u32 %v601, %v599
        %v605 = vshll.u32 %v562, 16
        %v607 = vrot.slane %v605, 1
        %v608 = vsel %vm564, %v603, %v607
        %v609 = vshrl.u32 %v562, 16
        %v611 = vor.u32 %v609, %v607
        %v613 = vshll.u32 %v563, 16
        %v615 = vrot.slane %v613, 1
        %v616 = vsel %vm564, %v611, %v615
        %v621 = vunpack.c.l.b16 %v527
        %v622 = vunpack.c.l.b16 %v528
        %v623 = vunpack.c.l.b16 %v529
        %v624 = vunpack.c.l.b16 %v530
        %v625 = vpack.c.b16 %v622, %v621
        %v626 = vpack.c.b16 %v624, %v623
        %vm629 = vcmask 261120
        %v631 = vsel %vm629, %v576, 0
        %v634 = vsel %vm629, %v584, 0
        %v637 = vsel %vm629, %v592, 0
        %v640 = vsel %vm629, %v600, 0
        %v643 = vsel %vm629, %v608, 0
        %v646 = vsel %vm629, %v616, 0
        %648 = vmatprep.subr.bf16.mxu0 0
        %649 = vmatpush1.bf16.msra.mxu0 0
        %650 = vmatprep.subr.bf16.mxu0 0
        %651 = vmatpush1.bf16.msra.mxu0 0
        %652 = vmatprep.subr.bf16.mxu0 0
        %653 = vmatpush1.bf16.msra.mxu0 0
        %654 = vmatprep.subr.bf16.mxu0 0
        %655 = vmatpush1.bf16.msra.mxu0 0
        %656 = vmatprep.subr.bf16.mxu0 0
        %657 = vmatpush1.bf16.msra.mxu0 0
        %658 = vmatprep.subr.bf16.mxu0 0
        %659 = vmatpush1.bf16.msra.mxu0 0
        %660 = vmatprep.subr.bf16.mxu0 0
        %661 = vmatpush1.bf16.msra.mxu0 %v626
        %662 = vmatprep.subr.bf16.mxu0 0
        %663 = vmatpush1.bf16.msra.mxu0 %v625
        %664 = vmatprep.subr.bf16.mxu0 0
        %665 = vmatpush2.bf16.msra.mxu0 0
        %666 = vmatprep.subr.bf16.mxu0 0
        %667 = vmatpush2.bf16.msra.mxu0 0
        %668 = vmatprep.subr.bf16.mxu0 0
        %669 = vmatpush2.bf16.msra.mxu0 0
        %670 = vmatprep.subr.bf16.mxu0 0
        %671 = vmatpush2.bf16.msra.mxu0 0
        %672 = vmatprep.subr.bf16.mxu0 0
        %673 = vmatpush2.bf16.msra.mxu0 0
        %674 = vmatprep.subr.bf16.mxu0 0
        %675 = vmatpush2.bf16.msra.mxu0 0
        %676 = vmatprep.subr.bf16.mxu0 0
        %677 = vmatpush2.bf16.msra.mxu0 0
        %678 = vmatprep.subr.bf16.mxu0 0
        %679 = vmatpush2.bf16.msra.mxu0 0
        %680 = vmatprep.mubr.bf16.mxu0 0
        %681 = vmatmul.mubr.bf16.gmra.mxu0 %v631
        %v682 = vpop.f32.mrf.mxu0
        %v683 = vadd.f32 0.0, %v682
        %v684 = vpop.f32.mrf.mxu0
        %v685 = vpop.f32.mrf.mxu0
        %v686 = vadd.f32 0.0, %v685
        %v687 = vpop.f32.mrf.mxu0
        %688 = vmatprep.mubr.bf16.mxu0 0
        %689 = vmatmul.mubr.bf16.gmra.mxu0 %v634
        %v690 = vpop.f32.mrf.mxu0
        %v691 = vadd.f32 0.0, %v690
        %v692 = vpop.f32.mrf.mxu0
        %v693 = vpop.f32.mrf.mxu0
        %v694 = vadd.f32 0.0, %v693
        %v695 = vpop.f32.mrf.mxu0
        %696 = vmatprep.mubr.bf16.mxu0 0
        %697 = vmatmul.mubr.bf16.gmra.mxu0 %v637
        %v698 = vpop.f32.mrf.mxu0
        %v699 = vadd.f32 0.0, %v698
        %v700 = vpop.f32.mrf.mxu0
        %v701 = vpop.f32.mrf.mxu0
        %v702 = vadd.f32 0.0, %v701
        %v703 = vpop.f32.mrf.mxu0
        %704 = vmatprep.mubr.bf16.mxu0 0
        %705 = vmatmul.mubr.bf16.gmra.mxu0 %v640
        %v706 = vpop.f32.mrf.mxu0
        %v707 = vadd.f32 0.0, %v706
        %v708 = vpop.f32.mrf.mxu0
        %v709 = vpop.f32.mrf.mxu0
        %v710 = vadd.f32 0.0, %v709
        %v711 = vpop.f32.mrf.mxu0
        %712 = vmatprep.mubr.bf16.mxu0 0
        %713 = vmatmul.mubr.bf16.gmra.mxu0 %v643
        %v714 = vpop.f32.mrf.mxu0
        %v715 = vadd.f32 0.0, %v714
        %v716 = vpop.f32.mrf.mxu0
        %v717 = vpop.f32.mrf.mxu0
        %v718 = vadd.f32 0.0, %v717
        %v719 = vpop.f32.mrf.mxu0
        %720 = vmatprep.mubr.bf16.mxu0 0
        %721 = vmatmul.mubr.bf16.gmra.mxu0 %v646
        %v722 = vpop.f32.mrf.mxu0
        %v723 = vadd.f32 0.0, %v722
        %v724 = vpop.f32.mrf.mxu0
        %v725 = vpop.f32.mrf.mxu0
        %v726 = vadd.f32 0.0, %v725
        %v727 = vpop.f32.mrf.mxu0
        %728 = vdwg.mxu0
        %v733 = vunpack.c.l.b16 %v521
        %v734 = vunpack.c.l.b16 %v522
        %v735 = vunpack.c.l.b16 %v523
        %v736 = vunpack.c.l.b16 %v524
        %v737 = vpack.c.b16 %v734, %v733
        %v738 = vpack.c.b16 %v736, %v735
        %v741 = vsel %vm629, %v557, 0
        %v743 = vsel %vm629, %v558, 0
        %v745 = vsel %vm629, %v559, 0
        %v747 = vsel %vm629, %v560, 0
        %v749 = vsel %vm629, %v561, 0
        %v751 = vsel %vm629, %v562, 0
        %753 = vmatprep.subr.bf16.mxu0 0
        %754 = vmatpush1.bf16.msra.mxu0 0
        %755 = vmatprep.subr.bf16.mxu0 0
        %756 = vmatpush1.bf16.msra.mxu0 0
        %757 = vmatprep.subr.bf16.mxu0 0
        %758 = vmatpush1.bf16.msra.mxu0 0
        %759 = vmatprep.subr.bf16.mxu0 0
        %760 = vmatpush1.bf16.msra.mxu0 0
        %761 = vmatprep.subr.bf16.mxu0 0
        %762 = vmatpush1.bf16.msra.mxu0 0
        %763 = vmatprep.subr.bf16.mxu0 0
        %764 = vmatpush1.bf16.msra.mxu0 0
        %765 = vmatprep.subr.bf16.mxu0 0
        %766 = vmatpush1.bf16.msra.mxu0 %v738
        %767 = vmatprep.subr.bf16.mxu0 0
        %768 = vmatpush1.bf16.msra.mxu0 %v737
        %769 = vmatprep.subr.bf16.mxu0 0
        %770 = vmatpush2.bf16.msra.mxu0 0
        %771 = vmatprep.subr.bf16.mxu0 0
        %772 = vmatpush2.bf16.msra.mxu0 0
        %773 = vmatprep.subr.bf16.mxu0 0
        %774 = vmatpush2.bf16.msra.mxu0 0
        %775 = vmatprep.subr.bf16.mxu0 0
        %776 = vmatpush2.bf16.msra.mxu0 0
        %777 = vmatprep.subr.bf16.mxu0 0
        %778 = vmatpush2.bf16.msra.mxu0 0
        %779 = vmatprep.subr.bf16.mxu0 0
        %780 = vmatpush2.bf16.msra.mxu0 0
        %781 = vmatprep.subr.bf16.mxu0 0
        %782 = vmatpush2.bf16.msra.mxu0 0
        %783 = vmatprep.subr.bf16.mxu0 0
        %784 = vmatpush2.bf16.msra.mxu0 0
        %785 = vmatprep.mubr.bf16.mxu0 0
        %786 = vmatmul.mubr.bf16.gmra.mxu0 %v741
        %v787 = vpop.f32.mrf.mxu0
        %v788 = vadd.f32 %v683, %v787
        %v789 = vpop.f32.mrf.mxu0
        %v790 = vpop.f32.mrf.mxu0
        %v791 = vadd.f32 %v686, %v790
        %v792 = vpop.f32.mrf.mxu0
        %793 = vmatprep.mubr.bf16.mxu0 0
        %794 = vmatmul.mubr.bf16.gmra.mxu0 %v743
        %v795 = vpop.f32.mrf.mxu0
        %v796 = vadd.f32 %v691, %v795
        %v797 = vpop.f32.mrf.mxu0
        %v798 = vpop.f32.mrf.mxu0
        %v799 = vadd.f32 %v694, %v798
        %v800 = vpop.f32.mrf.mxu0
        %801 = vmatprep.mubr.bf16.mxu0 0
        %802 = vmatmul.mubr.bf16.gmra.mxu0 %v745
        %v803 = vpop.f32.mrf.mxu0
        %v804 = vadd.f32 %v699, %v803
        %v805 = vpop.f32.mrf.mxu0
        %v806 = vpop.f32.mrf.mxu0
        %v807 = vadd.f32 %v702, %v806
        %v808 = vpop.f32.mrf.mxu0
        %809 = vmatprep.mubr.bf16.mxu0 0
        %810 = vmatmul.mubr.bf16.gmra.mxu0 %v747
        %v811 = vpop.f32.mrf.mxu0
        %v812 = vadd.f32 %v707, %v811
        %v813 = vpop.f32.mrf.mxu0
        %v814 = vpop.f32.mrf.mxu0
        %v815 = vadd.f32 %v710, %v814
        %v816 = vpop.f32.mrf.mxu0
        %817 = vmatprep.mubr.bf16.mxu0 0
        %818 = vmatmul.mubr.bf16.gmra.mxu0 %v749
        %v819 = vpop.f32.mrf.mxu0
        %v820 = vadd.f32 %v715, %v819
        %v821 = vpop.f32.mrf.mxu0
        %v822 = vpop.f32.mrf.mxu0
        %v823 = vadd.f32 %v718, %v822
        %v824 = vpop.f32.mrf.mxu0
        %825 = vmatprep.mubr.bf16.mxu0 0
        %826 = vmatmul.mubr.bf16.gmra.mxu0 %v751
        %v827 = vpop.f32.mrf.mxu0
        %v828 = vadd.f32 %v723, %v827
        %v829 = vpop.f32.mrf.mxu0
        %v830 = vpop.f32.mrf.mxu0
        %v831 = vadd.f32 %v726, %v830
        %v832 = vpop.f32.mrf.mxu0
        %833 = vdwg.mxu0
        %v834 = vld [vmem:[#allocation2] sm:$0xe]
        %s835 = scalar_lea.vmem %s4, 32
        %v836 = vld [vmem:[%s835] sm:$0xf]
        %v837 = vld [vmem:[%s835 + $0x4] sm:$0xf]
        %v838 = vld [vmem:[%s835 + $0x8] sm:$0xf]
        %v839 = vld [vmem:[%s835 + $0xc] sm:$0xf]
        %v841 = vunpack.c.l.b16 %v834
        %v842 = vpack.c.b16 %v545, %v841
        %vm843 = vcmask 1046528
        %v844 = vrot.slane %v842, 1
        %v845 = vrot.slane %v558, 1
        %v846 = vsel %vm843, %v844, %v845
        %v847 = vrot.slane %v559, 1
        %v848 = vsel %vm843, %v845, %v847
        %v849 = vrot.slane %v560, 1
        %v850 = vsel %vm843, %v847, %v849
        %v851 = vrot.slane %v561, 1
        %v852 = vsel %vm843, %v849, %v851
        %v853 = vrot.slane %v562, 1
        %v854 = vsel %vm843, %v851, %v853
        %v855 = vrot.slane %v563, 1
        %v856 = vsel %vm843, %v853, %v855
        %v861 = vunpack.c.l.b16 %v836
        %v862 = vunpack.c.l.b16 %v837
        %v863 = vunpack.c.l.b16 %v838
        %v864 = vunpack.c.l.b16 %v839
        %v865 = vpack.c.b16 %v862, %v861
        %v866 = vpack.c.b16 %v864, %v863
        %v870 = vsel %vm629, %v846, 0
        %v873 = vsel %vm629, %v848, 0
        %v876 = vsel %vm629, %v850, 0
        %v879 = vsel %vm629, %v852, 0
        %v882 = vsel %vm629, %v854, 0
        %v885 = vsel %vm629, %v856, 0
        %887 = vmatprep.subr.bf16.mxu0 0
        %888 = vmatpush1.bf16.msra.mxu0 0
        %889 = vmatprep.subr.bf16.mxu0 0
        %890 = vmatpush1.bf16.msra.mxu0 0
        %891 = vmatprep.subr.bf16.mxu0 0
        %892 = vmatpush1.bf16.msra.mxu0 0
        %893 = vmatprep.subr.bf16.mxu0 0
        %894 = vmatpush1.bf16.msra.mxu0 0
        %895 = vmatprep.subr.bf16.mxu0 0
        %896 = vmatpush1.bf16.msra.mxu0 0
        %897 = vmatprep.subr.bf16.mxu0 0
        %898 = vmatpush1.bf16.msra.mxu0 0
        %899 = vmatprep.subr.bf16.mxu0 0
        %900 = vmatpush1.bf16.msra.mxu0 %v866
        %901 = vmatprep.subr.bf16.mxu0 0
        %902 = vmatpush1.bf16.msra.mxu0 %v865
        %903 = vmatprep.subr.bf16.mxu0 0
        %904 = vmatpush2.bf16.msra.mxu0 0
        %905 = vmatprep.subr.bf16.mxu0 0
        %906 = vmatpush2.bf16.msra.mxu0 0
        %907 = vmatprep.subr.bf16.mxu0 0
        %908 = vmatpush2.bf16.msra.mxu0 0
        %909 = vmatprep.subr.bf16.mxu0 0
        %910 = vmatpush2.bf16.msra.mxu0 0
        %911 = vmatprep.subr.bf16.mxu0 0
        %912 = vmatpush2.bf16.msra.mxu0 0
        %913 = vmatprep.subr.bf16.mxu0 0
        %914 = vmatpush2.bf16.msra.mxu0 0
        %915 = vmatprep.subr.bf16.mxu0 0
        %916 = vmatpush2.bf16.msra.mxu0 0
        %917 = vmatprep.subr.bf16.mxu0 0
        %918 = vmatpush2.bf16.msra.mxu0 0
        %919 = vmatprep.mubr.bf16.mxu0 0
        %920 = vmatmul.mubr.bf16.gmra.mxu0 %v870
        %v921 = vpop.f32.mrf.mxu0
        %v922 = vadd.f32 0.0, %v921
        %v923 = vpop.f32.mrf.mxu0
        %v924 = vpop.f32.mrf.mxu0
        %v925 = vadd.f32 0.0, %v924
        %v926 = vpop.f32.mrf.mxu0
        %927 = vmatprep.mubr.bf16.mxu0 0
        %928 = vmatmul.mubr.bf16.gmra.mxu0 %v873
        %v929 = vpop.f32.mrf.mxu0
        %v930 = vadd.f32 0.0, %v929
        %v931 = vpop.f32.mrf.mxu0
        %v932 = vpop.f32.mrf.mxu0
        %v933 = vadd.f32 0.0, %v932
        %v934 = vpop.f32.mrf.mxu0
        %935 = vmatprep.mubr.bf16.mxu0 0
        %936 = vmatmul.mubr.bf16.gmra.mxu0 %v876
        %v937 = vpop.f32.mrf.mxu0
        %v938 = vadd.f32 0.0, %v937
        %v939 = vpop.f32.mrf.mxu0
        %v940 = vpop.f32.mrf.mxu0
        %v941 = vadd.f32 0.0, %v940
        %v942 = vpop.f32.mrf.mxu0
        %943 = vmatprep.mubr.bf16.mxu0 0
        %944 = vmatmul.mubr.bf16.gmra.mxu0 %v879
        %v945 = vpop.f32.mrf.mxu0
        %v946 = vadd.f32 0.0, %v945
        %v947 = vpop.f32.mrf.mxu0
        %v948 = vpop.f32.mrf.mxu0
        %v949 = vadd.f32 0.0, %v948
        %v950 = vpop.f32.mrf.mxu0
        %951 = vmatprep.mubr.bf16.mxu0 0
        %952 = vmatmul.mubr.bf16.gmra.mxu0 %v882
        %v953 = vpop.f32.mrf.mxu0
        %v954 = vadd.f32 0.0, %v953
        %v955 = vpop.f32.mrf.mxu0
        %v956 = vpop.f32.mrf.mxu0
        %v957 = vadd.f32 0.0, %v956
        %v958 = vpop.f32.mrf.mxu0
        %959 = vmatprep.mubr.bf16.mxu0 0
        %960 = vmatmul.mubr.bf16.gmra.mxu0 %v885
        %v961 = vpop.f32.mrf.mxu0
        %v962 = vadd.f32 0.0, %v961
        %v963 = vpop.f32.mrf.mxu0
        %v964 = vpop.f32.mrf.mxu0
        %v965 = vadd.f32 0.0, %v964
        %v966 = vpop.f32.mrf.mxu0
        %967 = vdwg.mxu0
        %v968 = vadd.f32 %v788, %v922
        %v969 = vadd.f32 %v791, %v925
        %v970 = vadd.f32 %v796, %v930
        %v971 = vadd.f32 %v799, %v933
        %v972 = vadd.f32 %v804, %v938
        %v973 = vadd.f32 %v807, %v941
        %v974 = vadd.f32 %v812, %v946
        %v975 = vadd.f32 %v815, %v949
        %v976 = vadd.f32 %v820, %v954
        %v977 = vadd.f32 %v823, %v957
        %v978 = vadd.f32 %v828, %v962
        %v979 = vadd.f32 %v831, %v965
        %v980 = vld [vmem:[#allocation2 + $0xc] sm:$0xf]
        %v981 = vld [vmem:[#allocation2 + $0x10] sm:$0xf]
        %v982 = vld [vmem:[#allocation2 + $0x14] sm:$0xf]
        %v983 = vld [vmem:[#allocation2 + $0x18] sm:$0xf]
        %v984 = vld [vmem:[#allocation2 + $0x1c] sm:$0xf]
        %v985 = vld [vmem:[#allocation2 + $0x20] sm:$0xf]
        %v986 = vld [vmem:[#allocation2 + $0x24] sm:$0xf]
        %v987 = vld [vmem:[#allocation2 + $0x28] sm:$0xf]
        %v988 = vld [vmem:[#allocation2 + $0x2c] sm:$0xf]
        %v989 = vld [vmem:[#allocation2 + $0x30] sm:$0xf]
        %v990 = vld [vmem:[#allocation2 + $0x34] sm:$0xf]
        %v991 = vld [vmem:[#allocation2 + $0x38] sm:$0xf]
        %s992 = scalar_lea.vmem %s4, 48
        %v993 = vld [vmem:[%s992] sm:$0xf]
        %v994 = vld [vmem:[%s992 + $0x4] sm:$0xf]
        %v995 = vld [vmem:[%s992 + $0x8] sm:$0xf]
        %v996 = vld [vmem:[%s992 + $0xc] sm:$0xf]
        %v1009 = vunpack.c.l.b16 %v980
        %v1010 = vunpack.c.l.b16 %v981
        %v1011 = vunpack.c.l.b16 %v982
        %v1012 = vunpack.c.l.b16 %v983
        %v1013 = vunpack.c.l.b16 %v984
        %v1014 = vunpack.c.l.b16 %v985
        %v1015 = vunpack.c.l.b16 %v986
        %v1016 = vunpack.c.l.b16 %v987
        %v1017 = vunpack.c.l.b16 %v988
        %v1018 = vunpack.c.l.b16 %v989
        %v1019 = vunpack.c.l.b16 %v990
        %v1020 = vunpack.c.l.b16 %v991
        %v1021 = vpack.c.b16 %v1010, %v1009
        %v1022 = vpack.c.b16 %v1012, %v1011
        %v1023 = vpack.c.b16 %v1014, %v1013
        %v1024 = vpack.c.b16 %v1016, %v1015
        %v1025 = vpack.c.b16 %v1018, %v1017
        %v1026 = vpack.c.b16 %v1020, %v1019
        %v1031 = vunpack.c.l.b16 %v993
        %v1032 = vunpack.c.l.b16 %v994
        %v1033 = vunpack.c.l.b16 %v995
        %v1034 = vunpack.c.l.b16 %v996
        %v1035 = vpack.c.b16 %v1032, %v1031
        %v1036 = vpack.c.b16 %v1034, %v1033
        %v1040 = vsel %vm629, %v1021, 0
        %v1043 = vsel %vm629, %v1022, 0
        %v1046 = vsel %vm629, %v1023, 0
        %v1049 = vsel %vm629, %v1024, 0
        %v1052 = vsel %vm629, %v1025, 0
        %v1055 = vsel %vm629, %v1026, 0
        %1057 = vmatprep.subr.bf16.mxu0 0
        %1058 = vmatpush1.bf16.msra.mxu0 0
        %1059 = vmatprep.subr.bf16.mxu0 0
        %1060 = vmatpush1.bf16.msra.mxu0 0
        %1061 = vmatprep.subr.bf16.mxu0 0
        %1062 = vmatpush1.bf16.msra.mxu0 0
        %1063 = vmatprep.subr.bf16.mxu0 0
        %1064 = vmatpush1.bf16.msra.mxu0 0
        %1065 = vmatprep.subr.bf16.mxu0 0
        %1066 = vmatpush1.bf16.msra.mxu0 0
        %1067 = vmatprep.subr.bf16.mxu0 0
        %1068 = vmatpush1.bf16.msra.mxu0 0
        %1069 = vmatprep.subr.bf16.mxu0 0
        %1070 = vmatpush1.bf16.msra.mxu0 %v1036
        %1071 = vmatprep.subr.bf16.mxu0 0
        %1072 = vmatpush1.bf16.msra.mxu0 %v1035
        %1073 = vmatprep.subr.bf16.mxu0 0
        %1074 = vmatpush2.bf16.msra.mxu0 0
        %1075 = vmatprep.subr.bf16.mxu0 0
        %1076 = vmatpush2.bf16.msra.mxu0 0
        %1077 = vmatprep.subr.bf16.mxu0 0
        %1078 = vmatpush2.bf16.msra.mxu0 0
        %1079 = vmatprep.subr.bf16.mxu0 0
        %1080 = vmatpush2.bf16.msra.mxu0 0
        %1081 = vmatprep.subr.bf16.mxu0 0
        %1082 = vmatpush2.bf16.msra.mxu0 0
        %1083 = vmatprep.subr.bf16.mxu0 0
        %1084 = vmatpush2.bf16.msra.mxu0 0
        %1085 = vmatprep.subr.bf16.mxu0 0
        %1086 = vmatpush2.bf16.msra.mxu0 0
        %1087 = vmatprep.subr.bf16.mxu0 0
        %1088 = vmatpush2.bf16.msra.mxu0 0
        %1089 = vmatprep.mubr.bf16.mxu0 0
        %1090 = vmatmul.mubr.bf16.gmra.mxu0 %v1040
        %v1091 = vpop.f32.mrf.mxu0
        %v1092 = vadd.f32 0.0, %v1091
        %v1093 = vpop.f32.mrf.mxu0
        %v1094 = vpop.f32.mrf.mxu0
        %v1095 = vadd.f32 0.0, %v1094
        %v1096 = vpop.f32.mrf.mxu0
        %1097 = vmatprep.mubr.bf16.mxu0 0
        %1098 = vmatmul.mubr.bf16.gmra.mxu0 %v1043
        %v1099 = vpop.f32.mrf.mxu0
        %v1100 = vadd.f32 0.0, %v1099
        %v1101 = vpop.f32.mrf.mxu0
        %v1102 = vpop.f32.mrf.mxu0
        %v1103 = vadd.f32 0.0, %v1102
        %v1104 = vpop.f32.mrf.mxu0
        %1105 = vmatprep.mubr.bf16.mxu0 0
        %1106 = vmatmul.mubr.bf16.gmra.mxu0 %v1046
        %v1107 = vpop.f32.mrf.mxu0
        %v1108 = vadd.f32 0.0, %v1107
        %v1109 = vpop.f32.mrf.mxu0
        %v1110 = vpop.f32.mrf.mxu0
        %v1111 = vadd.f32 0.0, %v1110
        %v1112 = vpop.f32.mrf.mxu0
        %1113 = vmatprep.mubr.bf16.mxu0 0
        %1114 = vmatmul.mubr.bf16.gmra.mxu0 %v1049
        %v1115 = vpop.f32.mrf.mxu0
        %v1116 = vadd.f32 0.0, %v1115
        %v1117 = vpop.f32.mrf.mxu0
        %v1118 = vpop.f32.mrf.mxu0
        %v1119 = vadd.f32 0.0, %v1118
        %v1120 = vpop.f32.mrf.mxu0
        %1121 = vmatprep.mubr.bf16.mxu0 0
        %1122 = vmatmul.mubr.bf16.gmra.mxu0 %v1052
        %v1123 = vpop.f32.mrf.mxu0
        %v1124 = vadd.f32 0.0, %v1123
        %v1125 = vpop.f32.mrf.mxu0
        %v1126 = vpop.f32.mrf.mxu0
        %v1127 = vadd.f32 0.0, %v1126
        %v1128 = vpop.f32.mrf.mxu0
        %1129 = vmatprep.mubr.bf16.mxu0 0
        %1130 = vmatmul.mubr.bf16.gmra.mxu0 %v1055
        %v1131 = vpop.f32.mrf.mxu0
        %v1132 = vadd.f32 0.0, %v1131
        %v1133 = vpop.f32.mrf.mxu0
        %v1134 = vpop.f32.mrf.mxu0
        %v1135 = vadd.f32 0.0, %v1134
        %v1136 = vpop.f32.mrf.mxu0
        %1137 = vdwg.mxu0
        %v1138 = vadd.f32 %v968, %v1092
        %v1139 = vadd.f32 %v969, %v1095
        %v1140 = vadd.f32 %v970, %v1100
        %v1141 = vadd.f32 %v971, %v1103
        %v1142 = vadd.f32 %v972, %v1108
        %v1143 = vadd.f32 %v973, %v1111
        %v1144 = vadd.f32 %v974, %v1116
        %v1145 = vadd.f32 %v975, %v1119
        %v1146 = vadd.f32 %v976, %v1124
        %v1147 = vadd.f32 %v977, %v1127
        %v1148 = vadd.f32 %v978, %v1132
        %v1149 = vadd.f32 %v979, %v1135
        %v1150 = vld [vmem:[#allocation2 + $0xc] sm:$0xf]
        %v1151 = vld [vmem:[#allocation2 + $0x10] sm:$0xf]
        %v1152 = vld [vmem:[#allocation2 + $0x14] sm:$0xf]
        %v1153 = vld [vmem:[#allocation2 + $0x18] sm:$0xf]
        %v1154 = vld [vmem:[#allocation2 + $0x1c] sm:$0xf]
        %v1155 = vld [vmem:[#allocation2 + $0x20] sm:$0xf]
        %v1156 = vld [vmem:[#allocation2 + $0x24] sm:$0xf]
        %v1157 = vld [vmem:[#allocation2 + $0x28] sm:$0xf]
        %v1158 = vld [vmem:[#allocation2 + $0x2c] sm:$0xf]
        %v1159 = vld [vmem:[#allocation2 + $0x30] sm:$0xf]
        %v1160 = vld [vmem:[#allocation2 + $0x34] sm:$0xf]
        %v1161 = vld [vmem:[#allocation2 + $0x38] sm:$0xf]
        %v1162 = vld [vmem:[#allocation2 + $0x3c] sm:$0x1]
        %s1163 = scalar_lea.vmem %s4, 64
        %v1164 = vld [vmem:[%s1163] sm:$0xf]
        %v1165 = vld [vmem:[%s1163 + $0x4] sm:$0xf]
        %v1166 = vld [vmem:[%s1163 + $0x8] sm:$0xf]
        %v1167 = vld [vmem:[%s1163 + $0xc] sm:$0xf]
        %v1181 = vunpack.c.l.b16 %v1150
        %v1182 = vunpack.c.l.b16 %v1151
        %v1183 = vunpack.c.l.b16 %v1152
        %v1184 = vunpack.c.l.b16 %v1153
        %v1185 = vunpack.c.l.b16 %v1154
        %v1186 = vunpack.c.l.b16 %v1155
        %v1187 = vunpack.c.l.b16 %v1156
        %v1188 = vunpack.c.l.b16 %v1157
        %v1189 = vunpack.c.l.b16 %v1158
        %v1190 = vunpack.c.l.b16 %v1159
        %v1191 = vunpack.c.l.b16 %v1160
        %v1192 = vunpack.c.l.b16 %v1161
        %v1193 = vunpack.c.l.b16 %v1162
        %v1194 = vpack.c.b16 %v1182, %v1181
        %v1195 = vpack.c.b16 %v1184, %v1183
        %v1196 = vpack.c.b16 %v1186, %v1185
        %v1197 = vpack.c.b16 %v1188, %v1187
        %v1198 = vpack.c.b16 %v1190, %v1189
        %v1199 = vpack.c.b16 %v1192, %v1191
        %v1200 = vpack.c.b16 %v1193, %v1193
        %v1202 = vshrl.u32 %v1194, 16
        %v1204 = vshll.u32 %v1194, 16
        %v1206 = vrot.slane %v1204, 1
        %v1207 = vor.u32 %v1202, %v1206
        %v1209 = vshll.u32 %v1195, 16
        %v1211 = vrot.slane %v1209, 1
        %v1212 = vsel %vm564, %v1207, %v1211
        %v1213 = vshrl.u32 %v1195, 16
        %v1215 = vor.u32 %v1213, %v1211
        %v1217 = vshll.u32 %v1196, 16
        %v1219 = vrot.slane %v1217, 1
        %v1220 = vsel %vm564, %v1215, %v1219
        %v1221 = vshrl.u32 %v1196, 16
        %v1223 = vor.u32 %v1221, %v1219
        %v1225 = vshll.u32 %v1197, 16
        %v1227 = vrot.slane %v1225, 1
        %v1228 = vsel %vm564, %v1223, %v1227
        %v1229 = vshrl.u32 %v1197, 16
        %v1231 = vor.u32 %v1229, %v1227
        %v1233 = vshll.u32 %v1198, 16
        %v1235 = vrot.slane %v1233, 1
        %v1236 = vsel %vm564, %v1231, %v1235
        %v1237 = vshrl.u32 %v1198, 16
        %v1239 = vor.u32 %v1237, %v1235
        %v1241 = vshll.u32 %v1199, 16
        %v1243 = vrot.slane %v1241, 1
        %v1244 = vsel %vm564, %v1239, %v1243
        %v1245 = vshrl.u32 %v1199, 16
        %v1247 = vor.u32 %v1245, %v1243
        %v1249 = vshll.u32 %v1200, 16
        %v1251 = vrot.slane %v1249, 1
        %v1252 = vsel %vm564, %v1247, %v1251
        %v1257 = vunpack.c.l.b16 %v1164
        %v1258 = vunpack.c.l.b16 %v1165
        %v1259 = vunpack.c.l.b16 %v1166
        %v1260 = vunpack.c.l.b16 %v1167
        %v1261 = vpack.c.b16 %v1258, %v1257
        %v1262 = vpack.c.b16 %v1260, %v1259
        %v1266 = vsel %vm629, %v1212, 0
        %v1269 = vsel %vm629, %v1220, 0
        %v1272 = vsel %vm629, %v1228, 0
        %v1275 = vsel %vm629, %v1236, 0
        %v1278 = vsel %vm629, %v1244, 0
        %v1281 = vsel %vm629, %v1252, 0
        %1283 = vmatprep.subr.bf16.mxu0 0
        %1284 = vmatpush1.bf16.msra.mxu0 0
        %1285 = vmatprep.subr.bf16.mxu0 0
        %1286 = vmatpush1.bf16.msra.mxu0 0
        %1287 = vmatprep.subr.bf16.mxu0 0
        %1288 = vmatpush1.bf16.msra.mxu0 0
        %1289 = vmatprep.subr.bf16.mxu0 0
        %1290 = vmatpush1.bf16.msra.mxu0 0
        %1291 = vmatprep.subr.bf16.mxu0 0
        %1292 = vmatpush1.bf16.msra.mxu0 0
        %1293 = vmatprep.subr.bf16.mxu0 0
        %1294 = vmatpush1.bf16.msra.mxu0 0
        %1295 = vmatprep.subr.bf16.mxu0 0
        %1296 = vmatpush1.bf16.msra.mxu0 %v1262
        %1297 = vmatprep.subr.bf16.mxu0 0
        %1298 = vmatpush1.bf16.msra.mxu0 %v1261
        %1299 = vmatprep.subr.bf16.mxu0 0
        %1300 = vmatpush2.bf16.msra.mxu0 0
        %1301 = vmatprep.subr.bf16.mxu0 0
        %1302 = vmatpush2.bf16.msra.mxu0 0
        %1303 = vmatprep.subr.bf16.mxu0 0
        %1304 = vmatpush2.bf16.msra.mxu0 0
        %1305 = vmatprep.subr.bf16.mxu0 0
        %1306 = vmatpush2.bf16.msra.mxu0 0
        %1307 = vmatprep.subr.bf16.mxu0 0
        %1308 = vmatpush2.bf16.msra.mxu0 0
        %1309 = vmatprep.subr.bf16.mxu0 0
        %1310 = vmatpush2.bf16.msra.mxu0 0
        %1311 = vmatprep.subr.bf16.mxu0 0
        %1312 = vmatpush2.bf16.msra.mxu0 0
        %1313 = vmatprep.subr.bf16.mxu0 0
        %1314 = vmatpush2.bf16.msra.mxu0 0
        %1315 = vmatprep.mubr.bf16.mxu0 0
        %1316 = vmatmul.mubr.bf16.gmra.mxu0 %v1266
        %v1317 = vpop.f32.mrf.mxu0
        %v1318 = vadd.f32 0.0, %v1317
        %v1319 = vpop.f32.mrf.mxu0
        %v1320 = vpop.f32.mrf.mxu0
        %v1321 = vadd.f32 0.0, %v1320
        %v1322 = vpop.f32.mrf.mxu0
        %1323 = vmatprep.mubr.bf16.mxu0 0
        %1324 = vmatmul.mubr.bf16.gmra.mxu0 %v1269
        %v1325 = vpop.f32.mrf.mxu0
        %v1326 = vadd.f32 0.0, %v1325
        %v1327 = vpop.f32.mrf.mxu0
        %v1328 = vpop.f32.mrf.mxu0
        %v1329 = vadd.f32 0.0, %v1328
        %v1330 = vpop.f32.mrf.mxu0
        %1331 = vmatprep.mubr.bf16.mxu0 0
        %1332 = vmatmul.mubr.bf16.gmra.mxu0 %v1272
        %v1333 = vpop.f32.mrf.mxu0
        %v1334 = vadd.f32 0.0, %v1333
        %v1335 = vpop.f32.mrf.mxu0
        %v1336 = vpop.f32.mrf.mxu0
        %v1337 = vadd.f32 0.0, %v1336
        %v1338 = vpop.f32.mrf.mxu0
        %1339 = vmatprep.mubr.bf16.mxu0 0
        %1340 = vmatmul.mubr.bf16.gmra.mxu0 %v1275
        %v1341 = vpop.f32.mrf.mxu0
        %v1342 = vadd.f32 0.0, %v1341
        %v1343 = vpop.f32.mrf.mxu0
        %v1344 = vpop.f32.mrf.mxu0
        %v1345 = vadd.f32 0.0, %v1344
        %v1346 = vpop.f32.mrf.mxu0
        %1347 = vmatprep.mubr.bf16.mxu0 0
        %1348 = vmatmul.mubr.bf16.gmra.mxu0 %v1278
        %v1349 = vpop.f32.mrf.mxu0
        %v1350 = vadd.f32 0.0, %v1349
        %v1351 = vpop.f32.mrf.mxu0
        %v1352 = vpop.f32.mrf.mxu0
        %v1353 = vadd.f32 0.0, %v1352
        %v1354 = vpop.f32.mrf.mxu0
        %1355 = vmatprep.mubr.bf16.mxu0 0
        %1356 = vmatmul.mubr.bf16.gmra.mxu0 %v1281
        %v1357 = vpop.f32.mrf.mxu0
        %v1358 = vadd.f32 0.0, %v1357
        %v1359 = vpop.f32.mrf.mxu0
        %v1360 = vpop.f32.mrf.mxu0
        %v1361 = vadd.f32 0.0, %v1360
        %v1362 = vpop.f32.mrf.mxu0
        %1363 = vdwg.mxu0
        %v1364 = vadd.f32 %v1138, %v1318
        %v1365 = vadd.f32 %v1139, %v1321
        %v1366 = vadd.f32 %v1140, %v1326
        %v1367 = vadd.f32 %v1141, %v1329
        %v1368 = vadd.f32 %v1142, %v1334
        %v1369 = vadd.f32 %v1143, %v1337
        %v1370 = vadd.f32 %v1144, %v1342
        %v1371 = vadd.f32 %v1145, %v1345
        %v1372 = vadd.f32 %v1146, %v1350
        %v1373 = vadd.f32 %v1147, %v1353
        %v1374 = vadd.f32 %v1148, %v1358
        %v1375 = vadd.f32 %v1149, %v1361
        %v1376 = vld [vmem:[#allocation2 + $0xc] sm:$0xe]
        %s1377 = scalar_lea.vmem %s4, 80
        %v1378 = vld [vmem:[%s1377] sm:$0xf]
        %v1379 = vld [vmem:[%s1377 + $0x4] sm:$0xf]
        %v1380 = vld [vmem:[%s1377 + $0x8] sm:$0xf]
        %v1381 = vld [vmem:[%s1377 + $0xc] sm:$0xf]
        %v1383 = vunpack.c.l.b16 %v1376
        %v1384 = vpack.c.b16 %v1182, %v1383
        %v1385 = vrot.slane %v1384, 1
        %v1386 = vrot.slane %v1195, 1
        %v1387 = vsel %vm843, %v1385, %v1386
        %v1388 = vrot.slane %v1196, 1
        %v1389 = vsel %vm843, %v1386, %v1388
        %v1390 = vrot.slane %v1197, 1
        %v1391 = vsel %vm843, %v1388, %v1390
        %v1392 = vrot.slane %v1198, 1
        %v1393 = vsel %vm843, %v1390, %v1392
        %v1394 = vrot.slane %v1199, 1
        %v1395 = vsel %vm843, %v1392, %v1394
        %v1396 = vrot.slane %v1200, 1
        %v1397 = vsel %vm843, %v1394, %v1396
        %v1402 = vunpack.c.l.b16 %v1378
        %v1403 = vunpack.c.l.b16 %v1379
        %v1404 = vunpack.c.l.b16 %v1380
        %v1405 = vunpack.c.l.b16 %v1381
        %v1406 = vpack.c.b16 %v1403, %v1402
        %v1407 = vpack.c.b16 %v1405, %v1404
        %v1411 = vsel %vm629, %v1387, 0
        %v1414 = vsel %vm629, %v1389, 0
        %v1417 = vsel %vm629, %v1391, 0
        %v1420 = vsel %vm629, %v1393, 0
        %v1423 = vsel %vm629, %v1395, 0
        %v1426 = vsel %vm629, %v1397, 0
        %1428 = vmatprep.subr.bf16.mxu0 0
        %1429 = vmatpush1.bf16.msra.mxu0 0
        %1430 = vmatprep.subr.bf16.mxu0 0
        %1431 = vmatpush1.bf16.msra.mxu0 0
        %1432 = vmatprep.subr.bf16.mxu0 0
        %1433 = vmatpush1.bf16.msra.mxu0 0
        %1434 = vmatprep.subr.bf16.mxu0 0
        %1435 = vmatpush1.bf16.msra.mxu0 0
        %1436 = vmatprep.subr.bf16.mxu0 0
        %1437 = vmatpush1.bf16.msra.mxu0 0
        %1438 = vmatprep.subr.bf16.mxu0 0
        %1439 = vmatpush1.bf16.msra.mxu0 0
        %1440 = vmatprep.subr.bf16.mxu0 0
        %1441 = vmatpush1.bf16.msra.mxu0 %v1407
        %1442 = vmatprep.subr.bf16.mxu0 0
        %1443 = vmatpush1.bf16.msra.mxu0 %v1406
        %1444 = vmatprep.subr.bf16.mxu0 0
        %1445 = vmatpush2.bf16.msra.mxu0 0
        %1446 = vmatprep.subr.bf16.mxu0 0
        %1447 = vmatpush2.bf16.msra.mxu0 0
        %1448 = vmatprep.subr.bf16.mxu0 0
        %1449 = vmatpush2.bf16.msra.mxu0 0
        %1450 = vmatprep.subr.bf16.mxu0 0
        %1451 = vmatpush2.bf16.msra.mxu0 0
        %1452 = vmatprep.subr.bf16.mxu0 0
        %1453 = vmatpush2.bf16.msra.mxu0 0
        %1454 = vmatprep.subr.bf16.mxu0 0
        %1455 = vmatpush2.bf16.msra.mxu0 0
        %1456 = vmatprep.subr.bf16.mxu0 0
        %1457 = vmatpush2.bf16.msra.mxu0 0
        %1458 = vmatprep.subr.bf16.mxu0 0
        %1459 = vmatpush2.bf16.msra.mxu0 0
        %1460 = vmatprep.mubr.bf16.mxu0 0
        %1461 = vmatmul.mubr.bf16.gmra.mxu0 %v1411
        %v1462 = vpop.f32.mrf.mxu0
        %v1463 = vadd.f32 0.0, %v1462
        %v1464 = vpop.f32.mrf.mxu0
        %v1465 = vpop.f32.mrf.mxu0
        %v1466 = vadd.f32 0.0, %v1465
        %v1467 = vpop.f32.mrf.mxu0
        %1468 = vmatprep.mubr.bf16.mxu0 0
        %1469 = vmatmul.mubr.bf16.gmra.mxu0 %v1414
        %v1470 = vpop.f32.mrf.mxu0
        %v1471 = vadd.f32 0.0, %v1470
        %v1472 = vpop.f32.mrf.mxu0
        %v1473 = vpop.f32.mrf.mxu0
        %v1474 = vadd.f32 0.0, %v1473
        %v1475 = vpop.f32.mrf.mxu0
        %1476 = vmatprep.mubr.bf16.mxu0 0
        %1477 = vmatmul.mubr.bf16.gmra.mxu0 %v1417
        %v1478 = vpop.f32.mrf.mxu0
        %v1479 = vadd.f32 0.0, %v1478
        %v1480 = vpop.f32.mrf.mxu0
        %v1481 = vpop.f32.mrf.mxu0
        %v1482 = vadd.f32 0.0, %v1481
        %v1483 = vpop.f32.mrf.mxu0
        %1484 = vmatprep.mubr.bf16.mxu0 0
        %1485 = vmatmul.mubr.bf16.gmra.mxu0 %v1420
        %v1486 = vpop.f32.mrf.mxu0
        %v1487 = vadd.f32 0.0, %v1486
        %v1488 = vpop.f32.mrf.mxu0
        %v1489 = vpop.f32.mrf.mxu0
        %v1490 = vadd.f32 0.0, %v1489
        %v1491 = vpop.f32.mrf.mxu0
        %1492 = vmatprep.mubr.bf16.mxu0 0
        %1493 = vmatmul.mubr.bf16.gmra.mxu0 %v1423
        %v1494 = vpop.f32.mrf.mxu0
        %v1495 = vadd.f32 0.0, %v1494
        %v1496 = vpop.f32.mrf.mxu0
        %v1497 = vpop.f32.mrf.mxu0
        %v1498 = vadd.f32 0.0, %v1497
        %v1499 = vpop.f32.mrf.mxu0
        %1500 = vmatprep.mubr.bf16.mxu0 0
        %1501 = vmatmul.mubr.bf16.gmra.mxu0 %v1426
        %v1502 = vpop.f32.mrf.mxu0
        %v1503 = vadd.f32 0.0, %v1502
        %v1504 = vpop.f32.mrf.mxu0
        %v1505 = vpop.f32.mrf.mxu0
        %v1506 = vadd.f32 0.0, %v1505
        %v1507 = vpop.f32.mrf.mxu0
        %1508 = vdwg.mxu0
        %v1509 = vadd.f32 %v1364, %v1463
        %v1510 = vadd.f32 %v1365, %v1466
        %v1511 = vadd.f32 %v1366, %v1471
        %v1512 = vadd.f32 %v1367, %v1474
        %v1513 = vadd.f32 %v1368, %v1479
        %v1514 = vadd.f32 %v1369, %v1482
        %v1515 = vadd.f32 %v1370, %v1487
        %v1516 = vadd.f32 %v1371, %v1490
        %v1517 = vadd.f32 %v1372, %v1495
        %v1518 = vadd.f32 %v1373, %v1498
        %v1519 = vadd.f32 %v1374, %v1503
        %v1520 = vadd.f32 %v1375, %v1506
        %v1521 = vld [vmem:[#allocation2 + $0x18] sm:$0xf]
        %v1522 = vld [vmem:[#allocation2 + $0x1c] sm:$0xf]
        %v1523 = vld [vmem:[#allocation2 + $0x20] sm:$0xf]
        %v1524 = vld [vmem:[#allocation2 + $0x24] sm:$0xf]
        %v1525 = vld [vmem:[#allocation2 + $0x28] sm:$0xf]
        %v1526 = vld [vmem:[#allocation2 + $0x2c] sm:$0xf]
        %v1527 = vld [vmem:[#allocation2 + $0x30] sm:$0xf]
        %v1528 = vld [vmem:[#allocation2 + $0x34] sm:$0xf]
        %v1529 = vld [vmem:[#allocation2 + $0x38] sm:$0xf]
        %v1530 = vld [vmem:[#allocation2 + $0x3c] sm:$0xf]
        %v1531 = vld [vmem:[#allocation2 + $0x40] sm:$0xf]
        %v1532 = vld [vmem:[#allocation2 + $0x44] sm:$0xf]
        %s1533 = scalar_lea.vmem %s4, 96
        %v1534 = vld [vmem:[%s1533] sm:$0xf]
        %v1535 = vld [vmem:[%s1533 + $0x4] sm:$0xf]
        %v1536 = vld [vmem:[%s1533 + $0x8] sm:$0xf]
        %v1537 = vld [vmem:[%s1533 + $0xc] sm:$0xf]
        %v1550 = vunpack.c.l.b16 %v1521
        %v1551 = vunpack.c.l.b16 %v1522
        %v1552 = vunpack.c.l.b16 %v1523
        %v1553 = vunpack.c.l.b16 %v1524
        %v1554 = vunpack.c.l.b16 %v1525
        %v1555 = vunpack.c.l.b16 %v1526
        %v1556 = vunpack.c.l.b16 %v1527
        %v1557 = vunpack.c.l.b16 %v1528
        %v1558 = vunpack.c.l.b16 %v1529
        %v1559 = vunpack.c.l.b16 %v1530
        %v1560 = vunpack.c.l.b16 %v1531
        %v1561 = vunpack.c.l.b16 %v1532
        %v1562 = vpack.c.b16 %v1551, %v1550
        %v1563 = vpack.c.b16 %v1553, %v1552
        %v1564 = vpack.c.b16 %v1555, %v1554
        %v1565 = vpack.c.b16 %v1557, %v1556
        %v1566 = vpack.c.b16 %v1559, %v1558
        %v1567 = vpack.c.b16 %v1561, %v1560
        %v1572 = vunpack.c.l.b16 %v1534
        %v1573 = vunpack.c.l.b16 %v1535
        %v1574 = vunpack.c.l.b16 %v1536
        %v1575 = vunpack.c.l.b16 %v1537
        %v1576 = vpack.c.b16 %v1573, %v1572
        %v1577 = vpack.c.b16 %v1575, %v1574
        %v1581 = vsel %vm629, %v1562, 0
        %v1584 = vsel %vm629, %v1563, 0
        %v1587 = vsel %vm629, %v1564, 0
        %v1590 = vsel %vm629, %v1565, 0
        %v1593 = vsel %vm629, %v1566, 0
        %v1596 = vsel %vm629, %v1567, 0
        %1598 = vmatprep.subr.bf16.mxu0 0
        %1599 = vmatpush1.bf16.msra.mxu0 0
        %1600 = vmatprep.subr.bf16.mxu0 0
        %1601 = vmatpush1.bf16.msra.mxu0 0
        %1602 = vmatprep.subr.bf16.mxu0 0
        %1603 = vmatpush1.bf16.msra.mxu0 0
        %1604 = vmatprep.subr.bf16.mxu0 0
        %1605 = vmatpush1.bf16.msra.mxu0 0
        %1606 = vmatprep.subr.bf16.mxu0 0
        %1607 = vmatpush1.bf16.msra.mxu0 0
        %1608 = vmatprep.subr.bf16.mxu0 0
        %1609 = vmatpush1.bf16.msra.mxu0 0
        %1610 = vmatprep.subr.bf16.mxu0 0
        %1611 = vmatpush1.bf16.msra.mxu0 %v1577
        %1612 = vmatprep.subr.bf16.mxu0 0
        %1613 = vmatpush1.bf16.msra.mxu0 %v1576
        %1614 = vmatprep.subr.bf16.mxu0 0
        %1615 = vmatpush2.bf16.msra.mxu0 0
        %1616 = vmatprep.subr.bf16.mxu0 0
        %1617 = vmatpush2.bf16.msra.mxu0 0
        %1618 = vmatprep.subr.bf16.mxu0 0
        %1619 = vmatpush2.bf16.msra.mxu0 0
        %1620 = vmatprep.subr.bf16.mxu0 0
        %1621 = vmatpush2.bf16.msra.mxu0 0
        %1622 = vmatprep.subr.bf16.mxu0 0
        %1623 = vmatpush2.bf16.msra.mxu0 0
        %1624 = vmatprep.subr.bf16.mxu0 0
        %1625 = vmatpush2.bf16.msra.mxu0 0
        %1626 = vmatprep.subr.bf16.mxu0 0
        %1627 = vmatpush2.bf16.msra.mxu0 0
        %1628 = vmatprep.subr.bf16.mxu0 0
        %1629 = vmatpush2.bf16.msra.mxu0 0
        %1630 = vmatprep.mubr.bf16.mxu0 0
        %1631 = vmatmul.mubr.bf16.gmra.mxu0 %v1581
        %v1632 = vpop.f32.mrf.mxu0
        %v1633 = vadd.f32 0.0, %v1632
        %v1634 = vpop.f32.mrf.mxu0
        %v1635 = vpop.f32.mrf.mxu0
        %v1636 = vadd.f32 0.0, %v1635
        %v1637 = vpop.f32.mrf.mxu0
        %1638 = vmatprep.mubr.bf16.mxu0 0
        %1639 = vmatmul.mubr.bf16.gmra.mxu0 %v1584
        %v1640 = vpop.f32.mrf.mxu0
        %v1641 = vadd.f32 0.0, %v1640
        %v1642 = vpop.f32.mrf.mxu0
        %v1643 = vpop.f32.mrf.mxu0
        %v1644 = vadd.f32 0.0, %v1643
        %v1645 = vpop.f32.mrf.mxu0
        %1646 = vmatprep.mubr.bf16.mxu0 0
        %1647 = vmatmul.mubr.bf16.gmra.mxu0 %v1587
        %v1648 = vpop.f32.mrf.mxu0
        %v1649 = vadd.f32 0.0, %v1648
        %v1650 = vpop.f32.mrf.mxu0
        %v1651 = vpop.f32.mrf.mxu0
        %v1652 = vadd.f32 0.0, %v1651
        %v1653 = vpop.f32.mrf.mxu0
        %1654 = vmatprep.mubr.bf16.mxu0 0
        %1655 = vmatmul.mubr.bf16.gmra.mxu0 %v1590
        %v1656 = vpop.f32.mrf.mxu0
        %v1657 = vadd.f32 0.0, %v1656
        %v1658 = vpop.f32.mrf.mxu0
        %v1659 = vpop.f32.mrf.mxu0
        %v1660 = vadd.f32 0.0, %v1659
        %v1661 = vpop.f32.mrf.mxu0
        %1662 = vmatprep.mubr.bf16.mxu0 0
        %1663 = vmatmul.mubr.bf16.gmra.mxu0 %v1593
        %v1664 = vpop.f32.mrf.mxu0
        %v1665 = vadd.f32 0.0, %v1664
        %v1666 = vpop.f32.mrf.mxu0
        %v1667 = vpop.f32.mrf.mxu0
        %v1668 = vadd.f32 0.0, %v1667
        %v1669 = vpop.f32.mrf.mxu0
        %1670 = vmatprep.mubr.bf16.mxu0 0
        %1671 = vmatmul.mubr.bf16.gmra.mxu0 %v1596
        %v1672 = vpop.f32.mrf.mxu0
        %v1673 = vadd.f32 0.0, %v1672
        %v1674 = vpop.f32.mrf.mxu0
        %v1675 = vpop.f32.mrf.mxu0
        %v1676 = vadd.f32 0.0, %v1675
        %v1677 = vpop.f32.mrf.mxu0
        %1678 = vdwg.mxu0
        %v1679 = vadd.f32 %v1509, %v1633
        %v1680 = vadd.f32 %v1510, %v1636
        %v1681 = vadd.f32 %v1511, %v1641
        %v1682 = vadd.f32 %v1512, %v1644
        %v1683 = vadd.f32 %v1513, %v1649
        %v1684 = vadd.f32 %v1514, %v1652
        %v1685 = vadd.f32 %v1515, %v1657
        %v1686 = vadd.f32 %v1516, %v1660
        %v1687 = vadd.f32 %v1517, %v1665
        %v1688 = vadd.f32 %v1518, %v1668
        %v1689 = vadd.f32 %v1519, %v1673
        %v1690 = vadd.f32 %v1520, %v1676
        %v1691 = vld [vmem:[#allocation2 + $0x18] sm:$0xf]
        %v1692 = vld [vmem:[#allocation2 + $0x1c] sm:$0xf]
        %v1693 = vld [vmem:[#allocation2 + $0x20] sm:$0xf]
        %v1694 = vld [vmem:[#allocation2 + $0x24] sm:$0xf]
        %v1695 = vld [vmem:[#allocation2 + $0x28] sm:$0xf]
        %v1696 = vld [vmem:[#allocation2 + $0x2c] sm:$0xf]
        %v1697 = vld [vmem:[#allocation2 + $0x30] sm:$0xf]
        %v1698 = vld [vmem:[#allocation2 + $0x34] sm:$0xf]
        %v1699 = vld [vmem:[#allocation2 + $0x38] sm:$0xf]
        %v1700 = vld [vmem:[#allocation2 + $0x3c] sm:$0xf]
        %v1701 = vld [vmem:[#allocation2 + $0x40] sm:$0xf]
        %v1702 = vld [vmem:[#allocation2 + $0x44] sm:$0xf]
        %v1703 = vld [vmem:[#allocation2 + $0x48] sm:$0x1]
        %s1704 = scalar_lea.vmem %s4, 112
        %v1705 = vld [vmem:[%s1704] sm:$0xf]
        %v1706 = vld [vmem:[%s1704 + $0x4] sm:$0xf]
        %v1707 = vld [vmem:[%s1704 + $0x8] sm:$0xf]
        %v1708 = vld [vmem:[%s1704 + $0xc] sm:$0xf]
        %v1722 = vunpack.c.l.b16 %v1691
        %v1723 = vunpack.c.l.b16 %v1692
        %v1724 = vunpack.c.l.b16 %v1693
        %v1725 = vunpack.c.l.b16 %v1694
        %v1726 = vunpack.c.l.b16 %v1695
        %v1727 = vunpack.c.l.b16 %v1696
        %v1728 = vunpack.c.l.b16 %v1697
        %v1729 = vunpack.c.l.b16 %v1698
        %v1730 = vunpack.c.l.b16 %v1699
        %v1731 = vunpack.c.l.b16 %v1700
        %v1732 = vunpack.c.l.b16 %v1701
        %v1733 = vunpack.c.l.b16 %v1702
        %v1734 = vunpack.c.l.b16 %v1703
        %v1735 = vpack.c.b16 %v1723, %v1722
        %v1736 = vpack.c.b16 %v1725, %v1724
        %v1737 = vpack.c.b16 %v1727, %v1726
        %v1738 = vpack.c.b16 %v1729, %v1728
        %v1739 = vpack.c.b16 %v1731, %v1730
        %v1740 = vpack.c.b16 %v1733, %v1732
        %v1741 = vpack.c.b16 %v1734, %v1734
        %v1743 = vshrl.u32 %v1735, 16
        %v1745 = vshll.u32 %v1735, 16
        %v1747 = vrot.slane %v1745, 1
        %v1748 = vor.u32 %v1743, %v1747
        %v1750 = vshll.u32 %v1736, 16
        %v1752 = vrot.slane %v1750, 1
        %v1753 = vsel %vm564, %v1748, %v1752
        %v1754 = vshrl.u32 %v1736, 16
        %v1756 = vor.u32 %v1754, %v1752
        %v1758 = vshll.u32 %v1737, 16
        %v1760 = vrot.slane %v1758, 1
        %v1761 = vsel %vm564, %v1756, %v1760
        %v1762 = vshrl.u32 %v1737, 16
        %v1764 = vor.u32 %v1762, %v1760
        %v1766 = vshll.u32 %v1738, 16
        %v1768 = vrot.slane %v1766, 1
        %v1769 = vsel %vm564, %v1764, %v1768
        %v1770 = vshrl.u32 %v1738, 16
        %v1772 = vor.u32 %v1770, %v1768
        %v1774 = vshll.u32 %v1739, 16
        %v1776 = vrot.slane %v1774, 1
        %v1777 = vsel %vm564, %v1772, %v1776
        %v1778 = vshrl.u32 %v1739, 16
        %v1780 = vor.u32 %v1778, %v1776
        %v1782 = vshll.u32 %v1740, 16
        %v1784 = vrot.slane %v1782, 1
        %v1785 = vsel %vm564, %v1780, %v1784
        %v1786 = vshrl.u32 %v1740, 16
        %v1788 = vor.u32 %v1786, %v1784
        %v1790 = vshll.u32 %v1741, 16
        %v1792 = vrot.slane %v1790, 1
        %v1793 = vsel %vm564, %v1788, %v1792
        %v1798 = vunpack.c.l.b16 %v1705
        %v1799 = vunpack.c.l.b16 %v1706
        %v1800 = vunpack.c.l.b16 %v1707
        %v1801 = vunpack.c.l.b16 %v1708
        %v1802 = vpack.c.b16 %v1799, %v1798
        %v1803 = vpack.c.b16 %v1801, %v1800
        %v1807 = vsel %vm629, %v1753, 0
        %v1810 = vsel %vm629, %v1761, 0
        %v1813 = vsel %vm629, %v1769, 0
        %v1816 = vsel %vm629, %v1777, 0
        %v1819 = vsel %vm629, %v1785, 0
        %v1822 = vsel %vm629, %v1793, 0
        %1824 = vmatprep.subr.bf16.mxu0 0
        %1825 = vmatpush1.bf16.msra.mxu0 0
        %1826 = vmatprep.subr.bf16.mxu0 0
        %1827 = vmatpush1.bf16.msra.mxu0 0
        %1828 = vmatprep.subr.bf16.mxu0 0
        %1829 = vmatpush1.bf16.msra.mxu0 0
        %1830 = vmatprep.subr.bf16.mxu0 0
        %1831 = vmatpush1.bf16.msra.mxu0 0
        %1832 = vmatprep.subr.bf16.mxu0 0
        %1833 = vmatpush1.bf16.msra.mxu0 0
        %1834 = vmatprep.subr.bf16.mxu0 0
        %1835 = vmatpush1.bf16.msra.mxu0 0
        %1836 = vmatprep.subr.bf16.mxu0 0
        %1837 = vmatpush1.bf16.msra.mxu0 %v1803
        %1838 = vmatprep.subr.bf16.mxu0 0
        %1839 = vmatpush1.bf16.msra.mxu0 %v1802
        %1840 = vmatprep.subr.bf16.mxu0 0
        %1841 = vmatpush2.bf16.msra.mxu0 0
        %1842 = vmatprep.subr.bf16.mxu0 0
        %1843 = vmatpush2.bf16.msra.mxu0 0
        %1844 = vmatprep.subr.bf16.mxu0 0
        %1845 = vmatpush2.bf16.msra.mxu0 0
        %1846 = vmatprep.subr.bf16.mxu0 0
        %1847 = vmatpush2.bf16.msra.mxu0 0
        %1848 = vmatprep.subr.bf16.mxu0 0
        %1849 = vmatpush2.bf16.msra.mxu0 0
        %1850 = vmatprep.subr.bf16.mxu0 0
        %1851 = vmatpush2.bf16.msra.mxu0 0
        %1852 = vmatprep.subr.bf16.mxu0 0
        %1853 = vmatpush2.bf16.msra.mxu0 0
        %1854 = vmatprep.subr.bf16.mxu0 0
        %1855 = vmatpush2.bf16.msra.mxu0 0
        %1856 = vmatprep.mubr.bf16.mxu0 0
        %1857 = vmatmul.mubr.bf16.gmra.mxu0 %v1807
        %v1858 = vpop.f32.mrf.mxu0
        %v1859 = vadd.f32 0.0, %v1858
        %v1860 = vpop.f32.mrf.mxu0
        %v1861 = vpop.f32.mrf.mxu0
        %v1862 = vadd.f32 0.0, %v1861
        %v1863 = vpop.f32.mrf.mxu0
        %1864 = vmatprep.mubr.bf16.mxu0 0
        %1865 = vmatmul.mubr.bf16.gmra.mxu0 %v1810
        %v1866 = vpop.f32.mrf.mxu0
        %v1867 = vadd.f32 0.0, %v1866
        %v1868 = vpop.f32.mrf.mxu0
        %v1869 = vpop.f32.mrf.mxu0
        %v1870 = vadd.f32 0.0, %v1869
        %v1871 = vpop.f32.mrf.mxu0
        %1872 = vmatprep.mubr.bf16.mxu0 0
        %1873 = vmatmul.mubr.bf16.gmra.mxu0 %v1813
        %v1874 = vpop.f32.mrf.mxu0
        %v1875 = vadd.f32 0.0, %v1874
        %v1876 = vpop.f32.mrf.mxu0
        %v1877 = vpop.f32.mrf.mxu0
        %v1878 = vadd.f32 0.0, %v1877
        %v1879 = vpop.f32.mrf.mxu0
        %1880 = vmatprep.mubr.bf16.mxu0 0
        %1881 = vmatmul.mubr.bf16.gmra.mxu0 %v1816
        %v1882 = vpop.f32.mrf.mxu0
        %v1883 = vadd.f32 0.0, %v1882
        %v1884 = vpop.f32.mrf.mxu0
        %v1885 = vpop.f32.mrf.mxu0
        %v1886 = vadd.f32 0.0, %v1885
        %v1887 = vpop.f32.mrf.mxu0
        %1888 = vmatprep.mubr.bf16.mxu0 0
        %1889 = vmatmul.mubr.bf16.gmra.mxu0 %v1819
        %v1890 = vpop.f32.mrf.mxu0
        %v1891 = vadd.f32 0.0, %v1890
        %v1892 = vpop.f32.mrf.mxu0
        %v1893 = vpop.f32.mrf.mxu0
        %v1894 = vadd.f32 0.0, %v1893
        %v1895 = vpop.f32.mrf.mxu0
        %1896 = vmatprep.mubr.bf16.mxu0 0
        %1897 = vmatmul.mubr.bf16.gmra.mxu0 %v1822
        %v1898 = vpop.f32.mrf.mxu0
        %v1899 = vadd.f32 0.0, %v1898
        %v1900 = vpop.f32.mrf.mxu0
        %v1901 = vpop.f32.mrf.mxu0
        %v1902 = vadd.f32 0.0, %v1901
        %v1903 = vpop.f32.mrf.mxu0
        %1904 = vdwg.mxu0
        %v1905 = vadd.f32 %v1679, %v1859
        %v1906 = vadd.f32 %v1680, %v1862
        %v1907 = vadd.f32 %v1681, %v1867
        %v1908 = vadd.f32 %v1682, %v1870
        %v1909 = vadd.f32 %v1683, %v1875
        %v1910 = vadd.f32 %v1684, %v1878
        %v1911 = vadd.f32 %v1685, %v1883
        %v1912 = vadd.f32 %v1686, %v1886
        %v1913 = vadd.f32 %v1687, %v1891
        %v1914 = vadd.f32 %v1688, %v1894
        %v1915 = vadd.f32 %v1689, %v1899
        %v1916 = vadd.f32 %v1690, %v1902
        %v1917 = vld [vmem:[#allocation2 + $0x18] sm:$0xe]
        %s1918 = scalar_lea.vmem %s4, 128
        %v1919 = vld [vmem:[%s1918] sm:$0xf]
        %v1920 = vld [vmem:[%s1918 + $0x4] sm:$0xf]
        %v1921 = vld [vmem:[%s1918 + $0x8] sm:$0xf]
        %v1922 = vld [vmem:[%s1918 + $0xc] sm:$0xf]
        %v1924 = vunpack.c.l.b16 %v1917
        %v1925 = vpack.c.b16 %v1723, %v1924
        %v1926 = vrot.slane %v1925, 1
        %v1927 = vrot.slane %v1736, 1
        %v1928 = vsel %vm843, %v1926, %v1927
        %v1929 = vrot.slane %v1737, 1
        %v1930 = vsel %vm843, %v1927, %v1929
        %v1931 = vrot.slane %v1738, 1
        %v1932 = vsel %vm843, %v1929, %v1931
        %v1933 = vrot.slane %v1739, 1
        %v1934 = vsel %vm843, %v1931, %v1933
        %v1935 = vrot.slane %v1740, 1
        %v1936 = vsel %vm843, %v1933, %v1935
        %v1937 = vrot.slane %v1741, 1
        %v1938 = vsel %vm843, %v1935, %v1937
        %v1943 = vunpack.c.l.b16 %v1919
        %v1944 = vunpack.c.l.b16 %v1920
        %v1945 = vunpack.c.l.b16 %v1921
        %v1946 = vunpack.c.l.b16 %v1922
        %v1947 = vpack.c.b16 %v1944, %v1943
        %v1948 = vpack.c.b16 %v1946, %v1945
        %v1952 = vsel %vm629, %v1928, 0
        %v1955 = vsel %vm629, %v1930, 0
        %v1958 = vsel %vm629, %v1932, 0
        %v1961 = vsel %vm629, %v1934, 0
        %v1964 = vsel %vm629, %v1936, 0
        %v1967 = vsel %vm629, %v1938, 0
        %1969 = vmatprep.subr.bf16.mxu0 0
        %1970 = vmatpush1.bf16.msra.mxu0 0
        %1971 = vmatprep.subr.bf16.mxu0 0
        %1972 = vmatpush1.bf16.msra.mxu0 0
        %1973 = vmatprep.subr.bf16.mxu0 0
        %1974 = vmatpush1.bf16.msra.mxu0 0
        %1975 = vmatprep.subr.bf16.mxu0 0
        %1976 = vmatpush1.bf16.msra.mxu0 0
        %1977 = vmatprep.subr.bf16.mxu0 0
        %1978 = vmatpush1.bf16.msra.mxu0 0
        %1979 = vmatprep.subr.bf16.mxu0 0
        %1980 = vmatpush1.bf16.msra.mxu0 0
        %1981 = vmatprep.subr.bf16.mxu0 0
        %1982 = vmatpush1.bf16.msra.mxu0 %v1948
        %1983 = vmatprep.subr.bf16.mxu0 0
        %1984 = vmatpush1.bf16.msra.mxu0 %v1947
        %1985 = vmatprep.subr.bf16.mxu0 0
        %1986 = vmatpush2.bf16.msra.mxu0 0
        %1987 = vmatprep.subr.bf16.mxu0 0
        %1988 = vmatpush2.bf16.msra.mxu0 0
        %1989 = vmatprep.subr.bf16.mxu0 0
        %1990 = vmatpush2.bf16.msra.mxu0 0
        %1991 = vmatprep.subr.bf16.mxu0 0
        %1992 = vmatpush2.bf16.msra.mxu0 0
        %1993 = vmatprep.subr.bf16.mxu0 0
        %1994 = vmatpush2.bf16.msra.mxu0 0
        %1995 = vmatprep.subr.bf16.mxu0 0
        %1996 = vmatpush2.bf16.msra.mxu0 0
        %1997 = vmatprep.subr.bf16.mxu0 0
        %1998 = vmatpush2.bf16.msra.mxu0 0
        %1999 = vmatprep.subr.bf16.mxu0 0
        %2000 = vmatpush2.bf16.msra.mxu0 0
        %2001 = vmatprep.mubr.bf16.mxu0 0
        %2002 = vmatmul.mubr.bf16.gmra.mxu0 %v1952
        %v2003 = vpop.f32.mrf.mxu0
        %v2004 = vadd.f32 0.0, %v2003
        %v2005 = vpop.f32.mrf.mxu0
        %v2006 = vpop.f32.mrf.mxu0
        %v2007 = vadd.f32 0.0, %v2006
        %v2008 = vpop.f32.mrf.mxu0
        %2009 = vmatprep.mubr.bf16.mxu0 0
        %2010 = vmatmul.mubr.bf16.gmra.mxu0 %v1955
        %v2011 = vpop.f32.mrf.mxu0
        %v2012 = vadd.f32 0.0, %v2011
        %v2013 = vpop.f32.mrf.mxu0
        %v2014 = vpop.f32.mrf.mxu0
        %v2015 = vadd.f32 0.0, %v2014
        %v2016 = vpop.f32.mrf.mxu0
        %2017 = vmatprep.mubr.bf16.mxu0 0
        %2018 = vmatmul.mubr.bf16.gmra.mxu0 %v1958
        %v2019 = vpop.f32.mrf.mxu0
        %v2020 = vadd.f32 0.0, %v2019
        %v2021 = vpop.f32.mrf.mxu0
        %v2022 = vpop.f32.mrf.mxu0
        %v2023 = vadd.f32 0.0, %v2022
        %v2024 = vpop.f32.mrf.mxu0
        %2025 = vmatprep.mubr.bf16.mxu0 0
        %2026 = vmatmul.mubr.bf16.gmra.mxu0 %v1961
        %v2027 = vpop.f32.mrf.mxu0
        %v2028 = vadd.f32 0.0, %v2027
        %v2029 = vpop.f32.mrf.mxu0
        %v2030 = vpop.f32.mrf.mxu0
        %v2031 = vadd.f32 0.0, %v2030
        %v2032 = vpop.f32.mrf.mxu0
        %2033 = vmatprep.mubr.bf16.mxu0 0
        %2034 = vmatmul.mubr.bf16.gmra.mxu0 %v1964
        %v2035 = vpop.f32.mrf.mxu0
        %v2036 = vadd.f32 0.0, %v2035
        %v2037 = vpop.f32.mrf.mxu0
        %v2038 = vpop.f32.mrf.mxu0
        %v2039 = vadd.f32 0.0, %v2038
        %v2040 = vpop.f32.mrf.mxu0
        %2041 = vmatprep.mubr.bf16.mxu0 0
        %2042 = vmatmul.mubr.bf16.gmra.mxu0 %v1967
        %v2043 = vpop.f32.mrf.mxu0
        %v2044 = vadd.f32 0.0, %v2043
        %v2045 = vpop.f32.mrf.mxu0
        %v2046 = vpop.f32.mrf.mxu0
        %v2047 = vadd.f32 0.0, %v2046
        %v2048 = vpop.f32.mrf.mxu0
        %2049 = vdwg.mxu0
        %v2050 = vadd.f32 %v1905, %v2004
        %v2051 = vadd.f32 %v1906, %v2007
        %v2052 = vadd.f32 %v1907, %v2012
        %v2053 = vadd.f32 %v1908, %v2015
        %v2054 = vadd.f32 %v1909, %v2020
        %v2055 = vadd.f32 %v1910, %v2023
        %v2056 = vadd.f32 %v1911, %v2028
        %v2057 = vadd.f32 %v1912, %v2031
        %v2058 = vadd.f32 %v1913, %v2036
        %v2059 = vadd.f32 %v1914, %v2039
        %v2060 = vadd.f32 %v1915, %v2044
        %v2061 = vadd.f32 %v1916, %v2047
        %v2062 = vld [vmem:[%s5] sm:$0x1]
        %v2064 = vlaneseq
        %v2065 = vshrl.u32 %v2064, 7
        %v2066 = vsub.s32 0, %v2065
        %v2067 = vrot.slane %v2062, %v2066
        %v2069 = vadd.f32 %v2050, %v2067
        %v2070 = vadd.f32 %v2051, %v2067
        %v2071 = vadd.f32 %v2052, %v2067
        %v2072 = vadd.f32 %v2053, %v2067
        %v2073 = vadd.f32 %v2054, %v2067
        %v2074 = vadd.f32 %v2055, %v2067
        %v2075 = vadd.f32 %v2056, %v2067
        %v2076 = vadd.f32 %v2057, %v2067
        %v2077 = vadd.f32 %v2058, %v2067
        %v2078 = vadd.f32 %v2059, %v2067
        %v2079 = vadd.f32 %v2060, %v2067
        %v2080 = vadd.f32 %v2061, %v2067
        %v2081 = vmax.f32 %v2069, 0.0
        %v2082 = vmax.f32 %v2070, 0.0
        %v2083 = vmax.f32 %v2071, 0.0
        %v2084 = vmax.f32 %v2072, 0.0
        %v2085 = vmax.f32 %v2073, 0.0
        %v2086 = vmax.f32 %v2074, 0.0
        %v2087 = vmax.f32 %v2075, 0.0
        %v2088 = vmax.f32 %v2076, 0.0
        %v2089 = vmax.f32 %v2077, 0.0
        %v2090 = vmax.f32 %v2078, 0.0
        %v2091 = vmax.f32 %v2079, 0.0
        %v2092 = vmax.f32 %v2080, 0.0
        %v2093 = vpack.c.bf16 %v2082, %v2081
        %v2094 = vpack.c.bf16 %v2084, %v2083
        %v2095 = vpack.c.bf16 %v2086, %v2085
        %v2096 = vpack.c.bf16 %v2088, %v2087
        %v2097 = vpack.c.bf16 %v2090, %v2089
        %v2098 = vpack.c.bf16 %v2092, %v2091
        %v2105 = vunpack.c.l.b16 %v2093
        %v2106 = vunpack.c.h.b16 %v2093
        %v2107 = vunpack.c.h.b16 %v2094
        %v2108 = vunpack.c.l.b16 %v2095
        %v2109 = vunpack.c.l.b16 %v2096
        %v2110 = vunpack.c.h.b16 %v2096
        %v2111 = vunpack.c.h.b16 %v2097
        %v2112 = vunpack.c.l.b16 %v2098
        %v2113 = vpack.c.b16 %v2105, %v2105
        %v2114 = vpack.c.b16 %v2106, %v2106
        %v2115 = vpack.c.b16 %v2107, %v2107
        %v2116 = vpack.c.b16 %v2108, %v2108
        %v2117 = vpack.c.b16 %v2109, %v2109
        %v2118 = vpack.c.b16 %v2110, %v2110
        %v2119 = vpack.c.b16 %v2111, %v2111
        %v2120 = vpack.c.b16 %v2112, %v2112
        %vm2129 = vcmask 519168
        %2130 = vst.msk [vmem:[%s399] sm:$0xf] %vm2129, %v2113
        %2131 = vst.msk [vmem:[%s399 + $0x4] sm:$0xf] %vm2129, %v2114
        %2132 = vst.msk [vmem:[%s399 + $0x8] sm:$0xf] %vm2129, %v2115
        %2133 = vst.msk [vmem:[%s399 + $0xc] sm:$0xf] %vm2129, %v2116
        %2134 = vst.msk [vmem:[%s399 + $0x10] sm:$0xf] %vm2129, %v2117
        %2135 = vst.msk [vmem:[%s399 + $0x14] sm:$0xf] %vm2129, %v2118
        %2136 = vst.msk [vmem:[%s399 + $0x18] sm:$0xf] %vm2129, %v2119
        %2137 = vst.msk [vmem:[%s399 + $0x1c] sm:$0xf] %vm2129, %v2120
        %s2138 = sand.u32 %s212, 1
        %s2139 = scalar_lea.sflag [#allocation4], %s2138
        %s2140 = sand.u32 %s212, 1
        %s2141 = smul.addr %s2140, 32
        %s2142 = scalar_lea.vmem [#allocation3], %s2141
        // Predicated region
        $region45: #{tpu_custom_call.1} parent=43 // pred_check
          %p2143 = pneg %p222
        $region46: #{tpu_custom_call.1} parent=43 // pred_check_branch
          %2145 = sbr.rel (%p2143) target = $region48
        $region47: #{tpu_custom_call.1} parent=43 // pred_region
          %s2146 = smul.u32 4, %s25
          %s2148 = ssub.s32 512, 512
          %2149 = vsyncadd %s2139, %s2148
          %s2150 = smul.addr %s2146, 2
          %s2151 = smul.addr %s24, 32
          %s2152 = sadd.s32 %s2150, %s2151
          %s2153 = smul.addr %s2152, 64
          %s2154 = scalar_lea.hbm %s6, %s2153
          %s2155 = sshll.u32 %s2142, 4
          %s2156 = int_to_ptr.vmem [resolvable:$true] %s2155
          %2161 = dma.vmem_to_hbm [thread:$0]  %s2156, 512, %s2154, %s2139, 64, 64, 4
        $region48: #{tpu_custom_call.1} parent=43 // pred_fallthru
          _
      $region44: #{tpu_custom_call.1} parent=5 // pred_fallthru
        _
      %p2162 = scmp.le.s32.totalorder 2, %s15
      // Predicated region
      $region49: #{tpu_custom_call.1} parent=5 // pred_check
        %p2163 = pneg %p2162
      $region50: #{tpu_custom_call.1} parent=5 // pred_check_branch
        %2165 = sbr.rel (%p2163) target = $region52
      $region51: #{tpu_custom_call.1} parent=5 // pred_region
        %s2166 = ssub.s32 %s15, 2
        // Predicated region
        $region53: #{tpu_custom_call.1} parent=51 // pred_check
          %p2167 = pneg %p228
        $region54: #{tpu_custom_call.1} parent=51 // pred_check_branch
          %2169 = sbr.rel (%p2167) target = $region56
        $region55: #{tpu_custom_call.1} parent=51 // pred_region
          %s2170 = sand.u32 %s213, 1
          %s2171 = scalar_lea.sflag [#allocation4], %s2170
          %s2172 = sand.u32 %s213, 1
          %s2173 = smul.addr %s2172, 32
          %s2174 = scalar_lea.vmem [#allocation3], %s2173
          %2175 = dma.done %s2171, 512
        $region56: #{tpu_custom_call.1} parent=51 // pred_fallthru
          _
      $region52: #{tpu_custom_call.1} parent=5 // pred_fallthru
        _
    $region6: #{tpu_custom_call.1} parent=1 // loop_footer
      %s19 = sadd.s32 1, %s15
    $region7: #{tpu_custom_call.1} parent=1 // loop_footer_branch
      %14 = sbr.rel target = $region3
    $region8: #{tpu_custom_call.1} parent=1 // loop_exit
      _
    %2176 = vsyncpa [#allocation4], 1
    %s2177 = scalar_lea.sflag [#allocation4], 1
    %2178 = vsyncpa %s2177, 1

</llo_original>
